<compile_context>
chip_gen: v5e
topology: v5e:2x2
jax: 0.10.0
libtpu: 0.0.40
codegen_flags: <defaults>
</compile_context>

<pallas_src>
import jax
import jax.numpy as jnp
from jax.experimental import pallas as pl
from jax.experimental.pallas import tpu as pltpu

A_DIM, V_DIM = 1024, 1408    # model dims from the PyTorch module (A_DIM unused here)
HIDDEN_1 = 256
HIDDEN_2 = 512


def _round_up(x, m):
    return (x + m - 1) // m * m


def _cdiv(a, b):
    return -(-a // b)


def mlp_reconst_v_kernel(x_ref, w1_ref, b1_ref, w2_ref, b2_ref, w3_ref, b3_ref,
                         o_ref):
    # Cast x to the matmul dtype on the VPU (kernel is MXU/DMA bound, VALU has slack).
    x = x_ref[...].astype(w1_ref.dtype)                           # (tm, 512) bf16
    # projav1 + ReLU  (bf16 MXU matmul, f32 accumulate, f32 bias add)
    h1 = jnp.dot(x, w1_ref[...], preferred_element_type=jnp.float32) + b1_ref[...]
    h1 = jnp.maximum(h1, 0.0).astype(w2_ref.dtype)
    # TODO(synk): dropout(p=out_dropout) is identity at inference; no RNG mask emitted.
    # projav2
    h2 = jnp.dot(h1, w2_ref[...], preferred_element_type=jnp.float32) + b2_ref[...]
    h2 = h2.astype(w3_ref.dtype)
    # out_layer
    out = jnp.dot(h2, w3_ref[...], preferred_element_type=jnp.float32) + b3_ref[...]
    o_ref[...] = out.astype(o_ref.dtype)


def prepare_params(params, compute_dtype=jnp.bfloat16):
    """One-time weight transpose + bf16 cast (hoisted out of the forward path).

    PyTorch nn.Linear weights are (out, in); we pre-transpose to (in, out) so
    the kernel runs plain row-major x @ W matmuls. Biases stay f32 (added on
    the f32 accumulator inside the kernel).
    """
    w1, b1, w2, b2, w3, b3 = params
    return (
        w1.T.astype(compute_dtype), b1.reshape(1, HIDDEN_2).astype(jnp.float32),
        w2.T.astype(compute_dtype), b2.reshape(1, HIDDEN_1).astype(jnp.float32),
        w3.T.astype(compute_dtype), b3.reshape(1, V_DIM).astype(jnp.float32),
    )


def _choose_tiling(M, desired_tm):
    """Pick (tm, m_pad) so that:
       - tm is a multiple of 8 (sublane),
       - the grid has >= 2 steps (ideally even) once M is non-trivial, so both
         v7x TensorCores are used by the "parallel" grid axis,
       - padding waste is bounded to a handful of rows (not a full tile)."""
    M8 = _round_up(max(M, 1), 8)
    if M8 <= 8:
        return M8, M8                      # tiny input: one 8-row step
    n = max(2, _cdiv(M8, desired_tm))      # at least 2 grid steps
    if n % 2:                              # even step count -> balanced megacore split
        n += 1
    tm = _round_up(_cdiv(M8, n), 8)
    m_pad = _round_up(M8, tm)              # <= n*tm; waste <= ~n*8 + 7 rows
    return tm, m_pad


def mlp_reconst_v(feats, prepared_params, *, desired_tm=512, out_dtype=jnp.bfloat16):
    """feats: (..., 512). prepared_params from prepare_params(). Returns (..., 1408).

    out_dtype defaults to bf16 (halves the dominant output writeback traffic);
    pass out_dtype=jnp.float32 if full-precision outputs are required.
    """
    w1t, b1r, w2t, b2r, w3t, b3r = prepared_params

    x = feats.reshape(-1, HIDDEN_2)
    M = x.shape[0]

    tm, m_pad = _choose_tiling(M, desired_tm)
    if m_pad != M:
        x = jnp.pad(x, ((0, m_pad - M), (0, 0)))
    # NOTE: no wrapper-side dtype cast; the kernel casts x on the VPU.

    grid = (m_pad // tm,)

    flops = 2 * m_pad * (HIDDEN_2 * HIDDEN_2 + HIDDEN_2 * HIDDEN_1 + HIDDEN_1 * V_DIM)
    bytes_accessed = (
        m_pad * HIDDEN_2 * x.dtype.itemsize                                   # x in
        + (HIDDEN_2 * HIDDEN_2 + HIDDEN_2 * HIDDEN_1 + HIDDEN_1 * V_DIM) * 2  # bf16 W
        + (HIDDEN_2 + HIDDEN_1 + V_DIM) * 4                                   # f32 b
        + m_pad * V_DIM * jnp.dtype(out_dtype).itemsize                       # out
    )

    # Weights/biases: constant index_map (stay resident) + single buffer.
    resident = lambda shape: pl.BlockSpec(shape, lambda i: (0, 0),
                                          pipeline_mode=pl.Buffered(1))

    out = pl.pallas_call(
        mlp_reconst_v_kernel,
        out_shape=jax.ShapeDtypeStruct((m_pad, V_DIM), out_dtype),
        grid_spec=pltpu.PrefetchScalarGridSpec(
            num_scalar_prefetch=0,
            grid=grid,
            in_specs=[
                pl.BlockSpec((tm, HIDDEN_2), lambda i: (i, 0)),   # x rows (pipelined)
                resident((HIDDEN_2, HIDDEN_2)),                   # W1^T
                resident((1, HIDDEN_2)),                          # b1
                resident((HIDDEN_2, HIDDEN_1)),                   # W2^T
                resident((1, HIDDEN_1)),                          # b2
                resident((HIDDEN_1, V_DIM)),                      # W3^T
                resident((1, V_DIM)),                             # b3
            ],
            out_specs=pl.BlockSpec((tm, V_DIM), lambda i: (i, 0)),
        ),
        compiler_params=pltpu.CompilerParams(
            dimension_semantics=("parallel",),
            vmem_limit_bytes=32 * 1024 * 1024),
        cost_estimate=pl.CostEstimate(flops=flops,
                                      transcendentals=0,
                                      bytes_accessed=bytes_accessed),
    )(x, w1t, b1r, w2t, b2r, w3t, b3r)

    if m_pad != M:
        out = out[:M]
    return out.reshape(*feats.shape[:-1], V_DIM)


def init_params(key):
    """Deterministic synthetic parameters with PyTorch nn.Linear shapes."""
    ks = jax.random.split(key, 6)
    # nn.Linear(in, out): weight (out, in), bias (out,)
    w1 = jax.random.normal(ks[0], (HIDDEN_2, HIDDEN_2), jnp.float32) * 0.02
    b1 = jax.random.normal(ks[1], (HIDDEN_2,), jnp.float32) * 0.02
    w2 = jax.random.normal(ks[2], (HIDDEN_1, HIDDEN_2), jnp.float32) * 0.02
    b2 = jax.random.normal(ks[3], (HIDDEN_1,), jnp.float32) * 0.02
    w3 = jax.random.normal(ks[4], (V_DIM, HIDDEN_1), jnp.float32) * 0.02
    b3 = jax.random.normal(ks[5], (V_DIM,), jnp.float32) * 0.02
    return (w1, b1, w2, b2, w3, b3)


def reference(feats, params):
    w1, b1, w2, b2, w3, b3 = params
    h1 = jnp.maximum(feats @ w1.T + b1, 0.0)
    h2 = h1 @ w2.T + b2
    return h2 @ w3.T + b3


if __name__ == "__main__":
    key = jax.random.PRNGKey(0)
    kx, kp = jax.random.split(key)
    params = init_params(kp)
    prepared = prepare_params(params)          # one-time transpose / bf16 cast

    # small shapes consistent with the forward: batch=2, seq=8, hidden_2=512
    feats = jax.random.normal(kx, (2, 8, HIDDEN_2), jnp.float32)

    out = mlp_reconst_v(feats, prepared)       # bf16 output by default
    out = jax.block_until_ready(out)

    ref = reference(feats, params)
    assert out.shape == (2, 8, V_DIM), out.shape
    # bf16 matmul operands + bf16 output with f32 accumulation: loosened tolerance.
    out_f32 = out.astype(jnp.float32)
    err = float(jnp.max(jnp.abs(out_f32 - ref)))
    assert jnp.allclose(out_f32, ref, atol=2e-2, rtol=2e-2), (
        f"mismatch vs reference, max abs err={err}")

    print("KERNEL_OK")
</pallas_src>

<mosaic_0001>
module attributes {stable_mosaic.version = 11 : i64} {
  func.func @mlp_reconst_v_kernel(%arg0: i32, %arg1: memref<8x512xf32, #tpu.memory_space<vmem>>, %arg2: memref<512x512xbf16, #tpu.memory_space<vmem>>, %arg3: memref<1x512xf32, #tpu.memory_space<vmem>>, %arg4: memref<512x256xbf16, #tpu.memory_space<vmem>>, %arg5: memref<1x256xf32, #tpu.memory_space<vmem>>, %arg6: memref<256x1408xbf16, #tpu.memory_space<vmem>>, %arg7: memref<1x1408xf32, #tpu.memory_space<vmem>>, %arg8: memref<8x1408xbf16, #tpu.memory_space<vmem>>) attributes {dimension_semantics = [#tpu.dimension_semantics<parallel>], iteration_bounds = array<i64: 2>, scalar_prefetch = 0 : i64, scratch_operands = 0 : i64, tpu.core_type = #tpu.core_type<tc>, window_params = [{transform_indices = @transform_0, window_bounds = array<i64: 8, 512>}, {pipeline_mode = #tpu.pipeline_mode<synchronous>, transform_indices = @transform_1, window_bounds = array<i64: 512, 512>}, {pipeline_mode = #tpu.pipeline_mode<synchronous>, transform_indices = @transform_2, window_bounds = array<i64: 1, 512>}, {pipeline_mode = #tpu.pipeline_mode<synchronous>, transform_indices = @transform_3, window_bounds = array<i64: 512, 256>}, {pipeline_mode = #tpu.pipeline_mode<synchronous>, transform_indices = @transform_4, window_bounds = array<i64: 1, 256>}, {pipeline_mode = #tpu.pipeline_mode<synchronous>, transform_indices = @transform_5, window_bounds = array<i64: 256, 1408>}, {pipeline_mode = #tpu.pipeline_mode<synchronous>, transform_indices = @transform_6, window_bounds = array<i64: 1, 1408>}, {transform_indices = @transform_7, window_bounds = array<i64: 8, 1408>}]} {
    %c0 = arith.constant 0 : index
    %c0_0 = arith.constant 0 : index
    %0 = vector.load %arg1[%c0, %c0_0] : memref<8x512xf32, #tpu.memory_space<vmem>>, vector<8x512xf32>
    %1 = arith.truncf %0 : vector<8x512xf32> to vector<8x512xbf16>
    %c0_1 = arith.constant 0 : index
    %c0_2 = arith.constant 0 : index
    %2 = vector.load %arg2[%c0_1, %c0_2] : memref<512x512xbf16, #tpu.memory_space<vmem>>, vector<512x512xbf16>
    %cst = arith.constant dense<0.000000e+00> : vector<8x512xf32>
    %3 = tpu.matmul %1, %2, %cst {dimension_numbers = #tpu.dot_dimension_numbers<[1], [0], [0], [1], [0, 0, 1, 1], [], []>} : vector<8x512xbf16>, vector<512x512xbf16>, vector<8x512xf32> -> vector<8x512xf32>
    %c0_3 = arith.constant 0 : index
    %c0_4 = arith.constant 0 : index
    %4 = vector.load %arg3[%c0_3, %c0_4] : memref<1x512xf32, #tpu.memory_space<vmem>>, vector<1x512xf32>
    %5 = vector.broadcast %4 : vector<1x512xf32> to vector<8x512xf32>
    %6 = arith.addf %3, %5 : vector<8x512xf32>
    %cst_5 = arith.constant 0.000000e+00 : f32
    %7 = vector.broadcast %cst_5 : f32 to vector<8x512xf32>
    %8 = arith.maximumf %6, %7 : vector<8x512xf32>
    %9 = arith.truncf %8 : vector<8x512xf32> to vector<8x512xbf16>
    %c0_6 = arith.constant 0 : index
    %c0_7 = arith.constant 0 : index
    %10 = vector.load %arg4[%c0_6, %c0_7] : memref<512x256xbf16, #tpu.memory_space<vmem>>, vector<512x256xbf16>
    %cst_8 = arith.constant dense<0.000000e+00> : vector<8x256xf32>
    %11 = tpu.matmul %9, %10, %cst_8 {dimension_numbers = #tpu.dot_dimension_numbers<[1], [0], [0], [1], [0, 0, 1, 1], [], []>} : vector<8x512xbf16>, vector<512x256xbf16>, vector<8x256xf32> -> vector<8x256xf32>
    %c0_9 = arith.constant 0 : index
    %c0_10 = arith.constant 0 : index
    %12 = vector.load %arg5[%c0_9, %c0_10] : memref<1x256xf32, #tpu.memory_space<vmem>>, vector<1x256xf32>
    %13 = vector.broadcast %12 : vector<1x256xf32> to vector<8x256xf32>
    %14 = arith.addf %11, %13 : vector<8x256xf32>
    %15 = arith.truncf %14 : vector<8x256xf32> to vector<8x256xbf16>
    %c0_11 = arith.constant 0 : index
    %c0_12 = arith.constant 0 : index
    %16 = vector.load %arg6[%c0_11, %c0_12] : memref<256x1408xbf16, #tpu.memory_space<vmem>>, vector<256x1408xbf16>
    %cst_13 = arith.constant dense<0.000000e+00> : vector<8x1408xf32>
    %17 = tpu.matmul %15, %16, %cst_13 {dimension_numbers = #tpu.dot_dimension_numbers<[1], [0], [0], [1], [0, 0, 1, 1], [], []>} : vector<8x256xbf16>, vector<256x1408xbf16>, vector<8x1408xf32> -> vector<8x1408xf32>
    %c0_14 = arith.constant 0 : index
    %c0_15 = arith.constant 0 : index
    %18 = vector.load %arg7[%c0_14, %c0_15] : memref<1x1408xf32, #tpu.memory_space<vmem>>, vector<1x1408xf32>
    %19 = vector.broadcast %18 : vector<1x1408xf32> to vector<8x1408xf32>
    %20 = arith.addf %17, %19 : vector<8x1408xf32>
    %21 = arith.truncf %20 : vector<8x1408xf32> to vector<8x1408xbf16>
    %c0_16 = arith.constant 0 : index
    %c0_17 = arith.constant 0 : index
    %22 = vector.load %arg8[%c0_16, %c0_17] : memref<8x1408xbf16, #tpu.memory_space<vmem>>, vector<8x1408xbf16>
    tpu.vector_store %arg8[%c0_16, %c0_17], %21 {strides = array<i32>} : memref<8x1408xbf16, #tpu.memory_space<vmem>>, vector<8x1408xbf16>,
    return
  }
  func.func @transform_0(%arg0: i32) -> (i32, i32) {
    %c0_i32 = arith.constant 0 : i32
    %c0_i32_0 = arith.constant 0 : i32
    return %arg0, %c0_i32 : i32, i32
  }
  func.func @transform_1(%arg0: i32) -> (i32, i32) {
    %c0_i32 = arith.constant 0 : i32
    %c0_i32_0 = arith.constant 0 : i32
    %c0_i32_1 = arith.constant 0 : i32
    return %c0_i32, %c0_i32_0 : i32, i32
  }
  func.func @transform_2(%arg0: i32) -> (i32, i32) {
    %c0_i32 = arith.constant 0 : i32
    %c0_i32_0 = arith.constant 0 : i32
    %c0_i32_1 = arith.constant 0 : i32
    return %c0_i32, %c0_i32_0 : i32, i32
  }
  func.func @transform_3(%arg0: i32) -> (i32, i32) {
    %c0_i32 = arith.constant 0 : i32
    %c0_i32_0 = arith.constant 0 : i32
    %c0_i32_1 = arith.constant 0 : i32
    return %c0_i32, %c0_i32_0 : i32, i32
  }
  func.func @transform_4(%arg0: i32) -> (i32, i32) {
    %c0_i32 = arith.constant 0 : i32
    %c0_i32_0 = arith.constant 0 : i32
    %c0_i32_1 = arith.constant 0 : i32
    return %c0_i32, %c0_i32_0 : i32, i32
  }
  func.func @transform_5(%arg0: i32) -> (i32, i32) {
    %c0_i32 = arith.constant 0 : i32
    %c0_i32_0 = arith.constant 0 : i32
    %c0_i32_1 = arith.constant 0 : i32
    return %c0_i32, %c0_i32_0 : i32, i32
  }
  func.func @transform_6(%arg0: i32) -> (i32, i32) {
    %c0_i32 = arith.constant 0 : i32
    %c0_i32_0 = arith.constant 0 : i32
    %c0_i32_1 = arith.constant 0 : i32
    return %c0_i32, %c0_i32_0 : i32, i32
  }
  func.func @transform_7(%arg0: i32) -> (i32, i32) {
    %c0_i32 = arith.constant 0 : i32
    %c0_i32_0 = arith.constant 0 : i32
    return %arg0, %c0_i32 : i32, i32
  }
}

</mosaic_0001>

<llo_original>
// kernel: tpu_custom_call.1
$region0: #{tpu_custom_call.1}
  #allocation0 [shape = 'u32[]', space=smem, size = 0x4, offset = 0x4, fixed_abs, tag = 'smem constant byte address 0x4 - core index']
  #allocation1 [shape = 'u32[72,128]{1,0:T(1,128)}', space=vmem, size = 0x9000, scoped, tag = 'internal scratch']
  %s0 = inlined_call_operand.hbm [shape: f32[16,512], index: 0, kind: input, shape index: {}]
  %s1 = inlined_call_operand.hbm [shape: bf16[512,512], index: 1, kind: input, shape index: {}]
  %s2 = inlined_call_operand.hbm [shape: f32[1,512], index: 2, kind: input, shape index: {}]
  %s3 = inlined_call_operand.hbm [shape: bf16[512,256], index: 3, kind: input, shape index: {}]
  %s4 = inlined_call_operand.vmem [shape: f32[1,256], index: 4, kind: input, shape index: {}]
  %s5 = inlined_call_operand.hbm [shape: bf16[256,1408], index: 5, kind: input, shape index: {}]
  %s6 = inlined_call_operand.hbm [shape: f32[1,1408], index: 6, kind: input, shape index: {}]
  %s7 = inlined_call_operand.hbm [shape: bf16[16,1408], index: 7, kind: output, shape index: {}]
  %s8 = sld [smem:[#allocation0]]
  $region85: #{tpu_custom_call.1} parent=0
    _
  %s10 = ssub.s32 1, %s8
  %s11 = scalar_select 0, %s10, %s8
  $region1: #{tpu_custom_call.1} parent=0
    #allocation2 [shape = 'u8[32768]{0}', space=vmem, size = 0x8000, scoped, tag = 'input window, operand 0']
    #allocation3 [shape = 's32[2]{0}', space=sflag, size = 0x8, scoped, tag = 'scoped memory for tpu_custom_call.1']
    #allocation4 [shape = 's32[2]{0}', space=sflag, size = 0x8, scoped, tag = 'scoped memory for tpu_custom_call.1']
    #allocation5 [shape = 'u8[524288]{0}', space=vmem, size = 0x80000, scoped, tag = 'input window, operand 1, single buffered']
    #allocation6 [shape = 's32[1]{0}', space=sflag, size = 0x4, scoped, tag = 'scoped memory for tpu_custom_call.1']
    #allocation7 [shape = 'u8[2048]{0}', space=vmem, size = 0x800, scoped, tag = 'input window, operand 2, single buffered']
    #allocation8 [shape = 'u8[262144]{0}', space=vmem, size = 0x40000, scoped, tag = 'input window, operand 3, single buffered']
    #allocation9 [shape = 's32[1]{0}', space=sflag, size = 0x4, scoped, tag = 'scoped memory for tpu_custom_call.1']
    #allocation10 [shape = 'u8[720896]{0}', space=vmem, size = 0xb0000, scoped, tag = 'input window, operand 5, single buffered']
    #allocation11 [shape = 'u8[5632]{0}', space=vmem, size = 0x1800, scoped, tag = 'input window, operand 6, single buffered']
    #allocation12 [shape = 's32[1]{0}', space=sflag, size = 0x4, scoped, tag = 'scoped memory for tpu_custom_call.1']
    #allocation13 [shape = 'u8[45056]{0}', space=vmem, size = 0xb000, scoped, tag = 'output window, operand 0']
    %12 = vsyncpa [#allocation3], 0
    %s13 = scalar_lea.sflag [#allocation3], 1
    %14 = vsyncpa %s13, 0
    %15 = vsyncpa [#allocation6], 0
    %16 = vsyncpa [#allocation9], 0
    %17 = vsyncpa [#allocation12], 0
    %18 = vsyncpa [#allocation4], 0
    %s19 = scalar_lea.sflag [#allocation4], 1
    %20 = vsyncpa %s19, 0
    loop: start=0, step=1, limit=4
    $region2: #{tpu_custom_call.1} parent=1 // loop_pre_header
      _
    $region3: #{tpu_custom_call.1} parent=1 // loop_header
      %s22 = sphi 0, %s26
      %p23 = scmp.ge.s32.totalorder %s22, 4
      %s32 = sphi 0, %s34
      %s35 = sphi 0, %s32
      %s36 = sphi 0, %s35
      %s52 = sphi 0, %s36
      %s56 = sphi 0, %s56
      %s58 = sphi 0, %s56
      %s59 = sphi 0, %s58
      %s73 = sphi 0, %s59
      %s77 = sphi 0, %s77
      %s79 = sphi 0, %s77
      %s80 = sphi 0, %s79
      %s94 = sphi 0, %s80
      %s98 = sphi 0, %s98
      %s100 = sphi 0, %s98
      %s101 = sphi 0, %s100
      %s115 = sphi 0, %s101
      %s119 = sphi 0, %s119
      %s121 = sphi 0, %s119
      %s122 = sphi 0, %s121
      %s136 = sphi 0, %s122
      %s140 = sphi 0, %s140
      %s142 = sphi 0, %s140
      %s143 = sphi 0, %s142
      %s157 = sphi 0, %s143
      %s161 = sphi 0, %s161
      %s163 = sphi 0, %s161
      %s164 = sphi 0, %s163
      %s178 = sphi 0, %s164
      %s184 = sphi 0, %s186
      %s187 = sphi 0, %s184
      %s188 = sphi 0, %s187
      %s204 = sphi 0, %s188
    $region4: #{tpu_custom_call.1} parent=1 // loop_header_branch
      %25 = sbr.rel (%p23) target = $region8
    $region5: #{tpu_custom_call.1} parent=1 // loop_body
      %s27 = ssub.s32 %s22, 1
      %s28 = ssub.s32 %s22, 2
      %s29 = sadd.s32 %s22, 1
      %s30 = ssub.s32 %s22, %s29
      %p31 = scmp.eq.s32.totalorder %s30, 0
      %s33 = sadd.s32 %s32, 1
      %s34 = scalar_select %p31, %s32, %s33
      %p37 = pneg %p31
      %p38 = scmp.eq.s32.totalorder %s22, 1
      %p39 = por %p37, %p38
      %p40 = scmp.ne.s32.totalorder %s32, %s35
      %p41 = scmp.eq.s32.totalorder %s22, 0
      %p42 = por %p40, %p41
      %p43 = scmp.ne.s32.totalorder %s32, %s35
      %p44 = scmp.eq.s32.totalorder %s27, 1
      %p45 = por %p43, %p44
      %p46 = scmp.ne.s32.totalorder %s35, %s36
      %p47 = scmp.eq.s32.totalorder %s27, 0
      %p48 = por %p46, %p47
      %p49 = scmp.ne.s32.totalorder %s35, %s36
      %p50 = scmp.eq.s32.totalorder %s28, 1
      %p51 = por %p49, %p50
      %p53 = scmp.ne.s32.totalorder %s36, %s52
      %p54 = scmp.eq.s32.totalorder %s28, 0
      %p55 = por %p53, %p54
      %s57 = sadd.s32 %s56, 1
      %p60 = scmp.eq.s32.totalorder %s22, 1
      %p61 = scmp.ne.s32.totalorder %s56, %s58
      %p62 = scmp.eq.s32.totalorder %s22, 0
      %p63 = por %p61, %p62
      %p64 = scmp.ne.s32.totalorder %s56, %s58
      %p65 = scmp.eq.s32.totalorder %s27, 1
      %p66 = por %p64, %p65
      %p67 = scmp.ne.s32.totalorder %s58, %s59
      %p68 = scmp.eq.s32.totalorder %s27, 0
      %p69 = por %p67, %p68
      %p70 = scmp.ne.s32.totalorder %s58, %s59
      %p71 = scmp.eq.s32.totalorder %s28, 1
      %p72 = por %p70, %p71
      %p74 = scmp.ne.s32.totalorder %s59, %s73
      %p75 = scmp.eq.s32.totalorder %s28, 0
      %p76 = por %p74, %p75
      %s78 = sadd.s32 %s77, 1
      %p81 = scmp.eq.s32.totalorder %s22, 1
      %p82 = scmp.ne.s32.totalorder %s77, %s79
      %p83 = scmp.eq.s32.totalorder %s22, 0
      %p84 = por %p82, %p83
      %p85 = scmp.ne.s32.totalorder %s77, %s79
      %p86 = scmp.eq.s32.totalorder %s27, 1
      %p87 = por %p85, %p86
      %p88 = scmp.ne.s32.totalorder %s79, %s80
      %p89 = scmp.eq.s32.totalorder %s27, 0
      %p90 = por %p88, %p89
      %p91 = scmp.ne.s32.totalorder %s79, %s80
      %p92 = scmp.eq.s32.totalorder %s28, 1
      %p93 = por %p91, %p92
      %p95 = scmp.ne.s32.totalorder %s80, %s94
      %p96 = scmp.eq.s32.totalorder %s28, 0
      %p97 = por %p95, %p96
      %s99 = sadd.s32 %s98, 1
      %p102 = scmp.eq.s32.totalorder %s22, 1
      %p103 = scmp.ne.s32.totalorder %s98, %s100
      %p104 = scmp.eq.s32.totalorder %s22, 0
      %p105 = por %p103, %p104
      %p106 = scmp.ne.s32.totalorder %s98, %s100
      %p107 = scmp.eq.s32.totalorder %s27, 1
      %p108 = por %p106, %p107
      %p109 = scmp.ne.s32.totalorder %s100, %s101
      %p110 = scmp.eq.s32.totalorder %s27, 0
      %p111 = por %p109, %p110
      %p112 = scmp.ne.s32.totalorder %s100, %s101
      %p113 = scmp.eq.s32.totalorder %s28, 1
      %p114 = por %p112, %p113
      %p116 = scmp.ne.s32.totalorder %s101, %s115
      %p117 = scmp.eq.s32.totalorder %s28, 0
      %p118 = por %p116, %p117
      %s120 = sadd.s32 %s119, 1
      %p123 = scmp.eq.s32.totalorder %s22, 1
      %p124 = scmp.ne.s32.totalorder %s119, %s121
      %p125 = scmp.eq.s32.totalorder %s22, 0
      %p126 = por %p124, %p125
      %p127 = scmp.ne.s32.totalorder %s119, %s121
      %p128 = scmp.eq.s32.totalorder %s27, 1
      %p129 = por %p127, %p128
      %p130 = scmp.ne.s32.totalorder %s121, %s122
      %p131 = scmp.eq.s32.totalorder %s27, 0
      %p132 = por %p130, %p131
      %p133 = scmp.ne.s32.totalorder %s121, %s122
      %p134 = scmp.eq.s32.totalorder %s28, 1
      %p135 = por %p133, %p134
      %p137 = scmp.ne.s32.totalorder %s122, %s136
      %p138 = scmp.eq.s32.totalorder %s28, 0
      %p139 = por %p137, %p138
      %s141 = sadd.s32 %s140, 1
      %p144 = scmp.eq.s32.totalorder %s22, 1
      %p145 = scmp.ne.s32.totalorder %s140, %s142
      %p146 = scmp.eq.s32.totalorder %s22, 0
      %p147 = por %p145, %p146
      %p148 = scmp.ne.s32.totalorder %s140, %s142
      %p149 = scmp.eq.s32.totalorder %s27, 1
      %p150 = por %p148, %p149
      %p151 = scmp.ne.s32.totalorder %s142, %s143
      %p152 = scmp.eq.s32.totalorder %s27, 0
      %p153 = por %p151, %p152
      %p154 = scmp.ne.s32.totalorder %s142, %s143
      %p155 = scmp.eq.s32.totalorder %s28, 1
      %p156 = por %p154, %p155
      %p158 = scmp.ne.s32.totalorder %s143, %s157
      %p159 = scmp.eq.s32.totalorder %s28, 0
      %p160 = por %p158, %p159
      %s162 = sadd.s32 %s161, 1
      %p165 = scmp.eq.s32.totalorder %s22, 1
      %p166 = scmp.ne.s32.totalorder %s161, %s163
      %p167 = scmp.eq.s32.totalorder %s22, 0
      %p168 = por %p166, %p167
      %p169 = scmp.ne.s32.totalorder %s161, %s163
      %p170 = scmp.eq.s32.totalorder %s27, 1
      %p171 = por %p169, %p170
      %p172 = scmp.ne.s32.totalorder %s163, %s164
      %p173 = scmp.eq.s32.totalorder %s27, 0
      %p174 = por %p172, %p173
      %p175 = scmp.ne.s32.totalorder %s163, %s164
      %p176 = scmp.eq.s32.totalorder %s28, 1
      %p177 = por %p175, %p176
      %p179 = scmp.ne.s32.totalorder %s164, %s178
      %p180 = scmp.eq.s32.totalorder %s28, 0
      %p181 = por %p179, %p180
      %s182 = ssub.s32 %s22, %s29
      %p183 = scmp.eq.s32.totalorder %s182, 0
      %s185 = sadd.s32 %s184, 1
      %s186 = scalar_select %p183, %s184, %s185
      %p189 = pneg %p183
      %p190 = scmp.eq.s32.totalorder %s22, 1
      %p191 = por %p189, %p190
      %p192 = scmp.ne.s32.totalorder %s184, %s187
      %p193 = scmp.eq.s32.totalorder %s22, 0
      %p194 = por %p192, %p193
      %p195 = scmp.ne.s32.totalorder %s184, %s187
      %p196 = scmp.eq.s32.totalorder %s27, 1
      %p197 = por %p195, %p196
      %p198 = scmp.ne.s32.totalorder %s187, %s188
      %p199 = scmp.eq.s32.totalorder %s27, 0
      %p200 = por %p198, %p199
      %p201 = scmp.ne.s32.totalorder %s187, %s188
      %p202 = scmp.eq.s32.totalorder %s28, 1
      %p203 = por %p201, %p202
      %p205 = scmp.ne.s32.totalorder %s188, %s204
      %p206 = scmp.eq.s32.totalorder %s28, 0
      %p207 = por %p205, %p206
      %p208 = scmp.le.s32.totalorder 1, %s22
      %p209 = scmp.lt.s32.totalorder %s22, 3
      %p210 = pnand %p208, %p209
      %p211 = pneg %p210
      // Predicated region
      $region9: #{tpu_custom_call.1} parent=5 // pred_check
        _
      $region10: #{tpu_custom_call.1} parent=5 // pred_check_branch
        %213 = sbr.rel (%p210) target = $region12
      $region11: #{tpu_custom_call.1} parent=5 // pred_region
        %s214 = ssub.s32 %s22, 1
        // Predicated region
        $region13: #{tpu_custom_call.1} parent=11 // pred_check
          %p215 = pneg %p69
        $region14: #{tpu_custom_call.1} parent=11 // pred_check_branch
          %217 = sbr.rel (%p215) target = $region16
        $region15: #{tpu_custom_call.1} parent=11 // pred_region
          %219 = vsyncadd [#allocation6], 0
          %s220 = sshll.u32 %s1, 4
          %s221 = int_to_ptr.hbm [resolvable:$true] %s220
          %s222 = sshll.u32 [#allocation5], 4
          %s223 = int_to_ptr.vmem [resolvable:$true] %s222
          %228 = dma.hbm_to_vmem [thread:$0]  %s221, 16384, %s223, [#allocation6], 256, 256, 16
        $region16: #{tpu_custom_call.1} parent=11 // pred_fallthru
          _
        // Predicated region
        $region17: #{tpu_custom_call.1} parent=11 // pred_check
          %p229 = pneg %p90
        $region18: #{tpu_custom_call.1} parent=11 // pred_check_branch
          %231 = sbr.rel (%p229) target = $region20
        $region19: #{tpu_custom_call.1} parent=11 // pred_region
          %233 = vsyncadd [#allocation6], 0
          %s235 = sshll.u32 %s2, 4
          %s236 = int_to_ptr.hbm [resolvable:$true] %s235
          %s237 = sshll.u32 [#allocation7], 4
          %s238 = int_to_ptr.vmem [resolvable:$true] %s237
          %240 = dma.hbm_to_vmem [thread:$0]  %s236, 64, %s238, [#allocation6]
        $region20: #{tpu_custom_call.1} parent=11 // pred_fallthru
          _
        // Predicated region
        $region21: #{tpu_custom_call.1} parent=11 // pred_check
          %p241 = pneg %p111
        $region22: #{tpu_custom_call.1} parent=11 // pred_check_branch
          %243 = sbr.rel (%p241) target = $region24
        $region23: #{tpu_custom_call.1} parent=11 // pred_region
          %245 = vsyncadd [#allocation9], 0
          %s246 = sshll.u32 %s3, 4
          %s247 = int_to_ptr.hbm [resolvable:$true] %s246
          %s248 = sshll.u32 [#allocation8], 4
          %s249 = int_to_ptr.vmem [resolvable:$true] %s248
          %254 = dma.hbm_to_vmem [thread:$0]  %s247, 8192, %s249, [#allocation9], 128, 128, 8
        $region24: #{tpu_custom_call.1} parent=11 // pred_fallthru
          _
        // Predicated region
        $region25: #{tpu_custom_call.1} parent=11 // pred_check
          %p255 = pneg %p132
        $region26: #{tpu_custom_call.1} parent=11 // pred_check_branch
          %257 = sbr.rel (%p255) target = $region28
        $region27: #{tpu_custom_call.1} parent=11 // pred_region
          _
        $region28: #{tpu_custom_call.1} parent=11 // pred_fallthru
          _
        // Predicated region
        $region29: #{tpu_custom_call.1} parent=11 // pred_check
          %p258 = pneg %p153
        $region30: #{tpu_custom_call.1} parent=11 // pred_check_branch
          %260 = sbr.rel (%p258) target = $region32
        $region31: #{tpu_custom_call.1} parent=11 // pred_region
          %262 = vsyncadd [#allocation9], 0
          %s263 = sshll.u32 %s5, 4
          %s264 = int_to_ptr.hbm [resolvable:$true] %s263
          %s265 = sshll.u32 [#allocation10], 4
          %s266 = int_to_ptr.vmem [resolvable:$true] %s265
          %271 = dma.hbm_to_vmem [thread:$0]  %s264, 22528, %s266, [#allocation9], 704, 704, 44
        $region32: #{tpu_custom_call.1} parent=11 // pred_fallthru
          _
        // Predicated region
        $region33: #{tpu_custom_call.1} parent=11 // pred_check
          %p272 = pneg %p174
        $region34: #{tpu_custom_call.1} parent=11 // pred_check_branch
          %274 = sbr.rel (%p272) target = $region36
        $region35: #{tpu_custom_call.1} parent=11 // pred_region
          %276 = vsyncadd [#allocation12], 0
          %s278 = sshll.u32 %s6, 4
          %s279 = int_to_ptr.hbm [resolvable:$true] %s278
          %s280 = sshll.u32 [#allocation11], 4
          %s281 = int_to_ptr.vmem [resolvable:$true] %s280
          %283 = dma.hbm_to_vmem [thread:$0]  %s279, 176, %s281, [#allocation12]
        $region36: #{tpu_custom_call.1} parent=11 // pred_fallthru
          _
      $region12: #{tpu_custom_call.1} parent=5 // pred_fallthru
        _
      %p284 = scmp.lt.s32.totalorder %s22, 2
      // Predicated region
      $region37: #{tpu_custom_call.1} parent=5 // pred_check
        %p285 = pneg %p284
      $region38: #{tpu_custom_call.1} parent=5 // pred_check_branch
        %287 = sbr.rel (%p285) target = $region40
      $region39: #{tpu_custom_call.1} parent=5 // pred_region
        // Predicated region
        $region41: #{tpu_custom_call.1} parent=39 // pred_check
          %p288 = pneg %p42
        $region42: #{tpu_custom_call.1} parent=39 // pred_check_branch
          %290 = sbr.rel (%p288) target = $region44
        $region43: #{tpu_custom_call.1} parent=39 // pred_region
          %s291 = sand.u32 %s32, 1
          %s292 = scalar_lea.sflag [#allocation3], %s291
          %s293 = sand.u32 %s32, 1
          %s294 = smul.addr %s293, 32
          %s295 = scalar_lea.vmem [#allocation2], %s294
          %297 = vsyncadd %s292, 0
          %s298 = smul.addr %s22, 4
          %s299 = smul.addr %s298, 8
          %s300 = scalar_lea.hbm %s0, %s299
          %s302 = sshll.u32 %s300, 4
          %s303 = int_to_ptr.hbm [resolvable:$true] %s302
          %s304 = sshll.u32 %s295, 4
          %s305 = int_to_ptr.vmem [resolvable:$true] %s304
          %307 = dma.hbm_to_vmem [thread:$0]  %s303, 512, %s305, %s292
        $region44: #{tpu_custom_call.1} parent=39 // pred_fallthru
          _
      $region40: #{tpu_custom_call.1} parent=5 // pred_fallthru
        _
      %p308 = scmp.le.s32.totalorder 1, %s22
      %p309 = scmp.lt.s32.totalorder %s22, 3
      %p310 = pnand %p308, %p309
      %p311 = pneg %p310
      // Predicated region
      $region45: #{tpu_custom_call.1} parent=5 // pred_check
        _
      $region46: #{tpu_custom_call.1} parent=5 // pred_check_branch
        %313 = sbr.rel (%p310) target = $region48
      $region47: #{tpu_custom_call.1} parent=5 // pred_region
        %s314 = ssub.s32 %s22, 1
        %s315 = sand.u32 %s35, 1
        %s316 = scalar_lea.sflag [#allocation3], %s315
        %s317 = sand.u32 %s35, 1
        %s318 = smul.addr %s317, 32
        %s319 = scalar_lea.vmem [#allocation2], %s318
        // Predicated region
        $region49: #{tpu_custom_call.1} parent=47 // pred_check
          %p320 = pneg %p48
        $region50: #{tpu_custom_call.1} parent=47 // pred_check_branch
          %322 = sbr.rel (%p320) target = $region52
        $region51: #{tpu_custom_call.1} parent=47 // pred_region
          %324 = dma.done %s316, 512
        $region52: #{tpu_custom_call.1} parent=47 // pred_fallthru
          _
        // Predicated region
        $region53: #{tpu_custom_call.1} parent=47 // pred_check
          %p325 = pneg %p69
        $region54: #{tpu_custom_call.1} parent=47 // pred_check_branch
          %327 = sbr.rel (%p325) target = $region56
        $region55: #{tpu_custom_call.1} parent=47 // pred_region
          %329 = dma.done [#allocation6], 16384
        $region56: #{tpu_custom_call.1} parent=47 // pred_fallthru
          _
        // Predicated region
        $region57: #{tpu_custom_call.1} parent=47 // pred_check
          %p330 = pneg %p90
        $region58: #{tpu_custom_call.1} parent=47 // pred_check_branch
          %332 = sbr.rel (%p330) target = $region60
        $region59: #{tpu_custom_call.1} parent=47 // pred_region
          %334 = dma.done [#allocation6], 64
        $region60: #{tpu_custom_call.1} parent=47 // pred_fallthru
          _
        // Predicated region
        $region61: #{tpu_custom_call.1} parent=47 // pred_check
          %p335 = pneg %p111
        $region62: #{tpu_custom_call.1} parent=47 // pred_check_branch
          %337 = sbr.rel (%p335) target = $region64
        $region63: #{tpu_custom_call.1} parent=47 // pred_region
          %339 = dma.done [#allocation9], 8192
        $region64: #{tpu_custom_call.1} parent=47 // pred_fallthru
          _
        // Predicated region
        $region65: #{tpu_custom_call.1} parent=47 // pred_check
          %p340 = pneg %p153
        $region66: #{tpu_custom_call.1} parent=47 // pred_check_branch
          %342 = sbr.rel (%p340) target = $region68
        $region67: #{tpu_custom_call.1} parent=47 // pred_region
          %344 = dma.done [#allocation9], 22528
        $region68: #{tpu_custom_call.1} parent=47 // pred_fallthru
          _
        // Predicated region
        $region69: #{tpu_custom_call.1} parent=47 // pred_check
          %p345 = pneg %p174
        $region70: #{tpu_custom_call.1} parent=47 // pred_check_branch
          %347 = sbr.rel (%p345) target = $region72
        $region71: #{tpu_custom_call.1} parent=47 // pred_region
          %349 = dma.done [#allocation12], 176
        $region72: #{tpu_custom_call.1} parent=47 // pred_fallthru
          _
        %s350 = sand.u32 %s35, 1
        %s351 = scalar_lea.sflag [#allocation3], %s350
        %s352 = sand.u32 %s35, 1
        %s353 = smul.addr %s352, 32
        %s354 = scalar_lea.vmem [#allocation2], %s353
        %p355 = pneg %p48
        %p356 = pneg %p45
        %p357 = pneg %p69
        %p358 = pneg %p66
        %p359 = pneg %p90
        %p360 = pneg %p87
        %p361 = pneg %p111
        %p362 = pneg %p108
        %p363 = pneg %p132
        %p364 = pneg %p129
        %p365 = pneg %p153
        %p366 = pneg %p150
        %p367 = pneg %p174
        %p368 = pneg %p171
        %p369 = pneg %p200
        %p370 = pneg %p197
        %s371 = sand.u32 %s187, 1
        %s372 = scalar_lea.sflag [#allocation4], %s371
        %s373 = sand.u32 %s187, 1
        %s374 = smul.addr %s373, 44
        %s375 = scalar_lea.vmem [#allocation13], %s374
        %v376 = vld [vmem:[%s319] sm:$0xff]
        %v377 = vld [vmem:[%s319 + $0x8] sm:$0xff]
        %v378 = vld [vmem:[%s319 + $0x10] sm:$0xff]
        %v379 = vld [vmem:[%s319 + $0x18] sm:$0xff]
        %v380 = vpack.c.bf16 %v376, %v376
        %v381 = vpack.c.bf16 %v377, %v377
        %v382 = vpack.c.bf16 %v378, %v378
        %v383 = vpack.c.bf16 %v379, %v379
        %v384 = vld [vmem:[#allocation5] sm:$0xff]
        %v385 = vld [vmem:[#allocation5 + $0x8] sm:$0xff]
        %v386 = vld [vmem:[#allocation5 + $0x10] sm:$0xff]
        %v387 = vld [vmem:[#allocation5 + $0x18] sm:$0xff]
        %v388 = vld [vmem:[#allocation5 + $0x20] sm:$0xff]
        %v389 = vld [vmem:[#allocation5 + $0x28] sm:$0xff]
        %v390 = vld [vmem:[#allocation5 + $0x30] sm:$0xff]
        %v391 = vld [vmem:[#allocation5 + $0x38] sm:$0xff]
        %v392 = vld [vmem:[#allocation5 + $0x40] sm:$0xff]
        %v393 = vld [vmem:[#allocation5 + $0x48] sm:$0xff]
        %v394 = vld [vmem:[#allocation5 + $0x50] sm:$0xff]
        %v395 = vld [vmem:[#allocation5 + $0x58] sm:$0xff]
        %v396 = vld [vmem:[#allocation5 + $0x60] sm:$0xff]
        %v397 = vld [vmem:[#allocation5 + $0x68] sm:$0xff]
        %v398 = vld [vmem:[#allocation5 + $0x70] sm:$0xff]
        %v399 = vld [vmem:[#allocation5 + $0x78] sm:$0xff]
        %v400 = vld [vmem:[#allocation5 + $0x80] sm:$0xff]
        %v401 = vld [vmem:[#allocation5 + $0x88] sm:$0xff]
        %v402 = vld [vmem:[#allocation5 + $0x90] sm:$0xff]
        %v403 = vld [vmem:[#allocation5 + $0x98] sm:$0xff]
        %v404 = vld [vmem:[#allocation5 + $0xa0] sm:$0xff]
        %v405 = vld [vmem:[#allocation5 + $0xa8] sm:$0xff]
        %v406 = vld [vmem:[#allocation5 + $0xb0] sm:$0xff]
        %v407 = vld [vmem:[#allocation5 + $0xb8] sm:$0xff]
        %v408 = vld [vmem:[#allocation5 + $0xc0] sm:$0xff]
        %v409 = vld [vmem:[#allocation5 + $0xc8] sm:$0xff]
        %v410 = vld [vmem:[#allocation5 + $0xd0] sm:$0xff]
        %v411 = vld [vmem:[#allocation5 + $0xd8] sm:$0xff]
        %v412 = vld [vmem:[#allocation5 + $0xe0] sm:$0xff]
        %v413 = vld [vmem:[#allocation5 + $0xe8] sm:$0xff]
        %v414 = vld [vmem:[#allocation5 + $0xf0] sm:$0xff]
        %v415 = vld [vmem:[#allocation5 + $0xf8] sm:$0xff]
        %v416 = vld [vmem:[#allocation5 + $0x100] sm:$0xff]
        %v417 = vld [vmem:[#allocation5 + $0x108] sm:$0xff]
        %v418 = vld [vmem:[#allocation5 + $0x110] sm:$0xff]
        %v419 = vld [vmem:[#allocation5 + $0x118] sm:$0xff]
        %v420 = vld [vmem:[#allocation5 + $0x120] sm:$0xff]
        %v421 = vld [vmem:[#allocation5 + $0x128] sm:$0xff]
        %v422 = vld [vmem:[#allocation5 + $0x130] sm:$0xff]
        %v423 = vld [vmem:[#allocation5 + $0x138] sm:$0xff]
        %v424 = vld [vmem:[#allocation5 + $0x140] sm:$0xff]
        %v425 = vld [vmem:[#allocation5 + $0x148] sm:$0xff]
        %v426 = vld [vmem:[#allocation5 + $0x150] sm:$0xff]
        %v427 = vld [vmem:[#allocation5 + $0x158] sm:$0xff]
        %v428 = vld [vmem:[#allocation5 + $0x160] sm:$0xff]
        %v429 = vld [vmem:[#allocation5 + $0x168] sm:$0xff]
        %v430 = vld [vmem:[#allocation5 + $0x170] sm:$0xff]
        %v431 = vld [vmem:[#allocation5 + $0x178] sm:$0xff]
        %v432 = vld [vmem:[#allocation5 + $0x180] sm:$0xff]
        %v433 = vld [vmem:[#allocation5 + $0x188] sm:$0xff]
        %v434 = vld [vmem:[#allocation5 + $0x190] sm:$0xff]
        %v435 = vld [vmem:[#allocation5 + $0x198] sm:$0xff]
        %v436 = vld [vmem:[#allocation5 + $0x1a0] sm:$0xff]
        %v437 = vld [vmem:[#allocation5 + $0x1a8] sm:$0xff]
        %v438 = vld [vmem:[#allocation5 + $0x1b0] sm:$0xff]
        %v439 = vld [vmem:[#allocation5 + $0x1b8] sm:$0xff]
        %v440 = vld [vmem:[#allocation5 + $0x1c0] sm:$0xff]
        %v441 = vld [vmem:[#allocation5 + $0x1c8] sm:$0xff]
        %v442 = vld [vmem:[#allocation5 + $0x1d0] sm:$0xff]
        %v443 = vld [vmem:[#allocation5 + $0x1d8] sm:$0xff]
        %v444 = vld [vmem:[#allocation5 + $0x1e0] sm:$0xff]
        %v445 = vld [vmem:[#allocation5 + $0x1e8] sm:$0xff]
        %v446 = vld [vmem:[#allocation5 + $0x1f0] sm:$0xff]
        %v447 = vld [vmem:[#allocation5 + $0x1f8] sm:$0xff]
        %v448 = vld [vmem:[#allocation5 + $0x200] sm:$0xff]
        %v449 = vld [vmem:[#allocation5 + $0x208] sm:$0xff]
        %v450 = vld [vmem:[#allocation5 + $0x210] sm:$0xff]
        %v451 = vld [vmem:[#allocation5 + $0x218] sm:$0xff]
        %v452 = vld [vmem:[#allocation5 + $0x220] sm:$0xff]
        %v453 = vld [vmem:[#allocation5 + $0x228] sm:$0xff]
        %v454 = vld [vmem:[#allocation5 + $0x230] sm:$0xff]
        %v455 = vld [vmem:[#allocation5 + $0x238] sm:$0xff]
        %v456 = vld [vmem:[#allocation5 + $0x240] sm:$0xff]
        %v457 = vld [vmem:[#allocation5 + $0x248] sm:$0xff]
        %v458 = vld [vmem:[#allocation5 + $0x250] sm:$0xff]
        %v459 = vld [vmem:[#allocation5 + $0x258] sm:$0xff]
        %v460 = vld [vmem:[#allocation5 + $0x260] sm:$0xff]
        %v461 = vld [vmem:[#allocation5 + $0x268] sm:$0xff]
        %v462 = vld [vmem:[#allocation5 + $0x270] sm:$0xff]
        %v463 = vld [vmem:[#allocation5 + $0x278] sm:$0xff]
        %v464 = vld [vmem:[#allocation5 + $0x280] sm:$0xff]
        %v465 = vld [vmem:[#allocation5 + $0x288] sm:$0xff]
        %v466 = vld [vmem:[#allocation5 + $0x290] sm:$0xff]
        %v467 = vld [vmem:[#allocation5 + $0x298] sm:$0xff]
        %v468 = vld [vmem:[#allocation5 + $0x2a0] sm:$0xff]
        %v469 = vld [vmem:[#allocation5 + $0x2a8] sm:$0xff]
        %v470 = vld [vmem:[#allocation5 + $0x2b0] sm:$0xff]
        %v471 = vld [vmem:[#allocation5 + $0x2b8] sm:$0xff]
        %v472 = vld [vmem:[#allocation5 + $0x2c0] sm:$0xff]
        %v473 = vld [vmem:[#allocation5 + $0x2c8] sm:$0xff]
        %v474 = vld [vmem:[#allocation5 + $0x2d0] sm:$0xff]
        %v475 = vld [vmem:[#allocation5 + $0x2d8] sm:$0xff]
        %v476 = vld [vmem:[#allocation5 + $0x2e0] sm:$0xff]
        %v477 = vld [vmem:[#allocation5 + $0x2e8] sm:$0xff]
        %v478 = vld [vmem:[#allocation5 + $0x2f0] sm:$0xff]
        %v479 = vld [vmem:[#allocation5 + $0x2f8] sm:$0xff]
        %v480 = vld [vmem:[#allocation5 + $0x300] sm:$0xff]
        %v481 = vld [vmem:[#allocation5 + $0x308] sm:$0xff]
        %v482 = vld [vmem:[#allocation5 + $0x310] sm:$0xff]
        %v483 = vld [vmem:[#allocation5 + $0x318] sm:$0xff]
        %v484 = vld [vmem:[#allocation5 + $0x320] sm:$0xff]
        %v485 = vld [vmem:[#allocation5 + $0x328] sm:$0xff]
        %v486 = vld [vmem:[#allocation5 + $0x330] sm:$0xff]
        %v487 = vld [vmem:[#allocation5 + $0x338] sm:$0xff]
        %v488 = vld [vmem:[#allocation5 + $0x340] sm:$0xff]
        %v489 = vld [vmem:[#allocation5 + $0x348] sm:$0xff]
        %v490 = vld [vmem:[#allocation5 + $0x350] sm:$0xff]
        %v491 = vld [vmem:[#allocation5 + $0x358] sm:$0xff]
        %v492 = vld [vmem:[#allocation5 + $0x360] sm:$0xff]
        %v493 = vld [vmem:[#allocation5 + $0x368] sm:$0xff]
        %v494 = vld [vmem:[#allocation5 + $0x370] sm:$0xff]
        %v495 = vld [vmem:[#allocation5 + $0x378] sm:$0xff]
        %v496 = vld [vmem:[#allocation5 + $0x380] sm:$0xff]
        %v497 = vld [vmem:[#allocation5 + $0x388] sm:$0xff]
        %v498 = vld [vmem:[#allocation5 + $0x390] sm:$0xff]
        %v499 = vld [vmem:[#allocation5 + $0x398] sm:$0xff]
        %v500 = vld [vmem:[#allocation5 + $0x3a0] sm:$0xff]
        %v501 = vld [vmem:[#allocation5 + $0x3a8] sm:$0xff]
        %v502 = vld [vmem:[#allocation5 + $0x3b0] sm:$0xff]
        %v503 = vld [vmem:[#allocation5 + $0x3b8] sm:$0xff]
        %v504 = vld [vmem:[#allocation5 + $0x3c0] sm:$0xff]
        %v505 = vld [vmem:[#allocation5 + $0x3c8] sm:$0xff]
        %v506 = vld [vmem:[#allocation5 + $0x3d0] sm:$0xff]
        %v507 = vld [vmem:[#allocation5 + $0x3d8] sm:$0xff]
        %v508 = vld [vmem:[#allocation5 + $0x3e0] sm:$0xff]
        %v509 = vld [vmem:[#allocation5 + $0x3e8] sm:$0xff]
        %v510 = vld [vmem:[#allocation5 + $0x3f0] sm:$0xff]
        %v511 = vld [vmem:[#allocation5 + $0x3f8] sm:$0xff]
        %v512 = vld [vmem:[#allocation7] sm:$0xf]
        %v514 = vperm.slane %v512, 0
        %v515 = vperm.slane %v512, 1
        %v516 = vperm.slane %v512, 2
        %v517 = vperm.slane %v512, 3
        %v650 = vunpack.c.l.b16 %v384
        %v651 = vunpack.c.h.b16 %v384
        %v652 = vunpack.c.l.b16 %v385
        %v653 = vunpack.c.h.b16 %v385
        %v654 = vunpack.c.l.b16 %v386
        %v655 = vunpack.c.h.b16 %v386
        %v656 = vunpack.c.l.b16 %v387
        %v657 = vunpack.c.h.b16 %v387
        %v658 = vunpack.c.l.b16 %v388
        %v659 = vunpack.c.h.b16 %v388
        %v660 = vunpack.c.l.b16 %v389
        %v661 = vunpack.c.h.b16 %v389
        %v662 = vunpack.c.l.b16 %v390
        %v663 = vunpack.c.h.b16 %v390
        %v664 = vunpack.c.l.b16 %v391
        %v665 = vunpack.c.h.b16 %v391
        %v666 = vunpack.c.l.b16 %v392
        %v667 = vunpack.c.h.b16 %v392
        %v668 = vunpack.c.l.b16 %v393
        %v669 = vunpack.c.h.b16 %v393
        %v670 = vunpack.c.l.b16 %v394
        %v671 = vunpack.c.h.b16 %v394
        %v672 = vunpack.c.l.b16 %v395
        %v673 = vunpack.c.h.b16 %v395
        %v674 = vunpack.c.l.b16 %v396
        %v675 = vunpack.c.h.b16 %v396
        %v676 = vunpack.c.l.b16 %v397
        %v677 = vunpack.c.h.b16 %v397
        %v678 = vunpack.c.l.b16 %v398
        %v679 = vunpack.c.h.b16 %v398
        %v680 = vunpack.c.l.b16 %v399
        %v681 = vunpack.c.h.b16 %v399
        %v682 = vunpack.c.l.b16 %v400
        %v683 = vunpack.c.h.b16 %v400
        %v684 = vunpack.c.l.b16 %v401
        %v685 = vunpack.c.h.b16 %v401
        %v686 = vunpack.c.l.b16 %v402
        %v687 = vunpack.c.h.b16 %v402
        %v688 = vunpack.c.l.b16 %v403
        %v689 = vunpack.c.h.b16 %v403
        %v690 = vunpack.c.l.b16 %v404
        %v691 = vunpack.c.h.b16 %v404
        %v692 = vunpack.c.l.b16 %v405
        %v693 = vunpack.c.h.b16 %v405
        %v694 = vunpack.c.l.b16 %v406
        %v695 = vunpack.c.h.b16 %v406
        %v696 = vunpack.c.l.b16 %v407
        %v697 = vunpack.c.h.b16 %v407
        %v698 = vunpack.c.l.b16 %v408
        %v699 = vunpack.c.h.b16 %v408
        %v700 = vunpack.c.l.b16 %v409
        %v701 = vunpack.c.h.b16 %v409
        %v702 = vunpack.c.l.b16 %v410
        %v703 = vunpack.c.h.b16 %v410
        %v704 = vunpack.c.l.b16 %v411
        %v705 = vunpack.c.h.b16 %v411
        %v706 = vunpack.c.l.b16 %v412
        %v707 = vunpack.c.h.b16 %v412
        %v708 = vunpack.c.l.b16 %v413
        %v709 = vunpack.c.h.b16 %v413
        %v710 = vunpack.c.l.b16 %v414
        %v711 = vunpack.c.h.b16 %v414
        %v712 = vunpack.c.l.b16 %v415
        %v713 = vunpack.c.h.b16 %v415
        %v714 = vunpack.c.l.b16 %v416
        %v715 = vunpack.c.h.b16 %v416
        %v716 = vunpack.c.l.b16 %v417
        %v717 = vunpack.c.h.b16 %v417
        %v718 = vunpack.c.l.b16 %v418
        %v719 = vunpack.c.h.b16 %v418
        %v720 = vunpack.c.l.b16 %v419
        %v721 = vunpack.c.h.b16 %v419
        %v722 = vunpack.c.l.b16 %v420
        %v723 = vunpack.c.h.b16 %v420
        %v724 = vunpack.c.l.b16 %v421
        %v725 = vunpack.c.h.b16 %v421
        %v726 = vunpack.c.l.b16 %v422
        %v727 = vunpack.c.h.b16 %v422
        %v728 = vunpack.c.l.b16 %v423
        %v729 = vunpack.c.h.b16 %v423
        %v730 = vunpack.c.l.b16 %v424
        %v731 = vunpack.c.h.b16 %v424
        %v732 = vunpack.c.l.b16 %v425
        %v733 = vunpack.c.h.b16 %v425
        %v734 = vunpack.c.l.b16 %v426
        %v735 = vunpack.c.h.b16 %v426
        %v736 = vunpack.c.l.b16 %v427
        %v737 = vunpack.c.h.b16 %v427
        %v738 = vunpack.c.l.b16 %v428
        %v739 = vunpack.c.h.b16 %v428
        %v740 = vunpack.c.l.b16 %v429
        %v741 = vunpack.c.h.b16 %v429
        %v742 = vunpack.c.l.b16 %v430
        %v743 = vunpack.c.h.b16 %v430
        %v744 = vunpack.c.l.b16 %v431
        %v745 = vunpack.c.h.b16 %v431
        %v746 = vunpack.c.l.b16 %v432
        %v747 = vunpack.c.h.b16 %v432
        %v748 = vunpack.c.l.b16 %v433
        %v749 = vunpack.c.h.b16 %v433
        %v750 = vunpack.c.l.b16 %v434
        %v751 = vunpack.c.h.b16 %v434
        %v752 = vunpack.c.l.b16 %v435
        %v753 = vunpack.c.h.b16 %v435
        %v754 = vunpack.c.l.b16 %v436
        %v755 = vunpack.c.h.b16 %v436
        %v756 = vunpack.c.l.b16 %v437
        %v757 = vunpack.c.h.b16 %v437
        %v758 = vunpack.c.l.b16 %v438
        %v759 = vunpack.c.h.b16 %v438
        %v760 = vunpack.c.l.b16 %v439
        %v761 = vunpack.c.h.b16 %v439
        %v762 = vunpack.c.l.b16 %v440
        %v763 = vunpack.c.h.b16 %v440
        %v764 = vunpack.c.l.b16 %v441
        %v765 = vunpack.c.h.b16 %v441
        %v766 = vunpack.c.l.b16 %v442
        %v767 = vunpack.c.h.b16 %v442
        %v768 = vunpack.c.l.b16 %v443
        %v769 = vunpack.c.h.b16 %v443
        %v770 = vunpack.c.l.b16 %v444
        %v771 = vunpack.c.h.b16 %v444
        %v772 = vunpack.c.l.b16 %v445
        %v773 = vunpack.c.h.b16 %v445
        %v774 = vunpack.c.l.b16 %v446
        %v775 = vunpack.c.h.b16 %v446
        %v776 = vunpack.c.l.b16 %v447
        %v777 = vunpack.c.h.b16 %v447
        %v778 = vunpack.c.l.b16 %v448
        %v779 = vunpack.c.h.b16 %v448
        %v780 = vunpack.c.l.b16 %v449
        %v781 = vunpack.c.h.b16 %v449
        %v782 = vunpack.c.l.b16 %v450
        %v783 = vunpack.c.h.b16 %v450
        %v784 = vunpack.c.l.b16 %v451
        %v785 = vunpack.c.h.b16 %v451
        %v786 = vunpack.c.l.b16 %v452
        %v787 = vunpack.c.h.b16 %v452
        %v788 = vunpack.c.l.b16 %v453
        %v789 = vunpack.c.h.b16 %v453
        %v790 = vunpack.c.l.b16 %v454
        %v791 = vunpack.c.h.b16 %v454
        %v792 = vunpack.c.l.b16 %v455
        %v793 = vunpack.c.h.b16 %v455
        %v794 = vunpack.c.l.b16 %v456
        %v795 = vunpack.c.h.b16 %v456
        %v796 = vunpack.c.l.b16 %v457
        %v797 = vunpack.c.h.b16 %v457
        %v798 = vunpack.c.l.b16 %v458
        %v799 = vunpack.c.h.b16 %v458
        %v800 = vunpack.c.l.b16 %v459
        %v801 = vunpack.c.h.b16 %v459
        %v802 = vunpack.c.l.b16 %v460
        %v803 = vunpack.c.h.b16 %v460
        %v804 = vunpack.c.l.b16 %v461
        %v805 = vunpack.c.h.b16 %v461
        %v806 = vunpack.c.l.b16 %v462
        %v807 = vunpack.c.h.b16 %v462
        %v808 = vunpack.c.l.b16 %v463
        %v809 = vunpack.c.h.b16 %v463
        %v810 = vunpack.c.l.b16 %v464
        %v811 = vunpack.c.h.b16 %v464
        %v812 = vunpack.c.l.b16 %v465
        %v813 = vunpack.c.h.b16 %v465
        %v814 = vunpack.c.l.b16 %v466
        %v815 = vunpack.c.h.b16 %v466
        %v816 = vunpack.c.l.b16 %v467
        %v817 = vunpack.c.h.b16 %v467
        %v818 = vunpack.c.l.b16 %v468
        %v819 = vunpack.c.h.b16 %v468
        %v820 = vunpack.c.l.b16 %v469
        %v821 = vunpack.c.h.b16 %v469
        %v822 = vunpack.c.l.b16 %v470
        %v823 = vunpack.c.h.b16 %v470
        %v824 = vunpack.c.l.b16 %v471
        %v825 = vunpack.c.h.b16 %v471
        %v826 = vunpack.c.l.b16 %v472
        %v827 = vunpack.c.h.b16 %v472
        %v828 = vunpack.c.l.b16 %v473
        %v829 = vunpack.c.h.b16 %v473
        %v830 = vunpack.c.l.b16 %v474
        %v831 = vunpack.c.h.b16 %v474
        %v832 = vunpack.c.l.b16 %v475
        %v833 = vunpack.c.h.b16 %v475
        %v834 = vunpack.c.l.b16 %v476
        %v835 = vunpack.c.h.b16 %v476
        %v836 = vunpack.c.l.b16 %v477
        %v837 = vunpack.c.h.b16 %v477
        %v838 = vunpack.c.l.b16 %v478
        %v839 = vunpack.c.h.b16 %v478
        %v840 = vunpack.c.l.b16 %v479
        %v841 = vunpack.c.h.b16 %v479
        %v842 = vunpack.c.l.b16 %v480
        %v843 = vunpack.c.h.b16 %v480
        %v844 = vunpack.c.l.b16 %v481
        %v845 = vunpack.c.h.b16 %v481
        %v846 = vunpack.c.l.b16 %v482
        %v847 = vunpack.c.h.b16 %v482
        %v848 = vunpack.c.l.b16 %v483
        %v849 = vunpack.c.h.b16 %v483
        %v850 = vunpack.c.l.b16 %v484
        %v851 = vunpack.c.h.b16 %v484
        %v852 = vunpack.c.l.b16 %v485
        %v853 = vunpack.c.h.b16 %v485
        %v854 = vunpack.c.l.b16 %v486
        %v855 = vunpack.c.h.b16 %v486
        %v856 = vunpack.c.l.b16 %v487
        %v857 = vunpack.c.h.b16 %v487
        %v858 = vunpack.c.l.b16 %v488
        %v859 = vunpack.c.h.b16 %v488
        %v860 = vunpack.c.l.b16 %v489
        %v861 = vunpack.c.h.b16 %v489
        %v862 = vunpack.c.l.b16 %v490
        %v863 = vunpack.c.h.b16 %v490
        %v864 = vunpack.c.l.b16 %v491
        %v865 = vunpack.c.h.b16 %v491
        %v866 = vunpack.c.l.b16 %v492
        %v867 = vunpack.c.h.b16 %v492
        %v868 = vunpack.c.l.b16 %v493
        %v869 = vunpack.c.h.b16 %v493
        %v870 = vunpack.c.l.b16 %v494
        %v871 = vunpack.c.h.b16 %v494
        %v872 = vunpack.c.l.b16 %v495
        %v873 = vunpack.c.h.b16 %v495
        %v874 = vunpack.c.l.b16 %v496
        %v875 = vunpack.c.h.b16 %v496
        %v876 = vunpack.c.l.b16 %v497
        %v877 = vunpack.c.h.b16 %v497
        %v878 = vunpack.c.l.b16 %v498
        %v879 = vunpack.c.h.b16 %v498
        %v880 = vunpack.c.l.b16 %v499
        %v881 = vunpack.c.h.b16 %v499
        %v882 = vunpack.c.l.b16 %v500
        %v883 = vunpack.c.h.b16 %v500
        %v884 = vunpack.c.l.b16 %v501
        %v885 = vunpack.c.h.b16 %v501
        %v886 = vunpack.c.l.b16 %v502
        %v887 = vunpack.c.h.b16 %v502
        %v888 = vunpack.c.l.b16 %v503
        %v889 = vunpack.c.h.b16 %v503
        %v890 = vunpack.c.l.b16 %v504
        %v891 = vunpack.c.h.b16 %v504
        %v892 = vunpack.c.l.b16 %v505
        %v893 = vunpack.c.h.b16 %v505
        %v894 = vunpack.c.l.b16 %v506
        %v895 = vunpack.c.h.b16 %v506
        %v896 = vunpack.c.l.b16 %v507
        %v897 = vunpack.c.h.b16 %v507
        %v898 = vunpack.c.l.b16 %v508
        %v899 = vunpack.c.h.b16 %v508
        %v900 = vunpack.c.l.b16 %v509
        %v901 = vunpack.c.h.b16 %v509
        %v902 = vunpack.c.l.b16 %v510
        %v903 = vunpack.c.h.b16 %v510
        %v904 = vunpack.c.l.b16 %v511
        %v905 = vunpack.c.h.b16 %v511
        %v906 = vpack.c.b16 %v654, %v650
        %v907 = vpack.c.b16 %v655, %v651
        %v908 = vpack.c.b16 %v656, %v652
        %v909 = vpack.c.b16 %v657, %v653
        %v910 = vpack.c.b16 %v662, %v658
        %v911 = vpack.c.b16 %v663, %v659
        %v912 = vpack.c.b16 %v664, %v660
        %v913 = vpack.c.b16 %v665, %v661
        %v914 = vpack.c.b16 %v670, %v666
        %v915 = vpack.c.b16 %v671, %v667
        %v916 = vpack.c.b16 %v672, %v668
        %v917 = vpack.c.b16 %v673, %v669
        %v918 = vpack.c.b16 %v678, %v674
        %v919 = vpack.c.b16 %v679, %v675
        %v920 = vpack.c.b16 %v680, %v676
        %v921 = vpack.c.b16 %v681, %v677
        %v922 = vpack.c.b16 %v686, %v682
        %v923 = vpack.c.b16 %v687, %v683
        %v924 = vpack.c.b16 %v688, %v684
        %v925 = vpack.c.b16 %v689, %v685
        %v926 = vpack.c.b16 %v694, %v690
        %v927 = vpack.c.b16 %v695, %v691
        %v928 = vpack.c.b16 %v696, %v692
        %v929 = vpack.c.b16 %v697, %v693
        %v930 = vpack.c.b16 %v702, %v698
        %v931 = vpack.c.b16 %v703, %v699
        %v932 = vpack.c.b16 %v704, %v700
        %v933 = vpack.c.b16 %v705, %v701
        %v934 = vpack.c.b16 %v710, %v706
        %v935 = vpack.c.b16 %v711, %v707
        %v936 = vpack.c.b16 %v712, %v708
        %v937 = vpack.c.b16 %v713, %v709
        %v938 = vpack.c.b16 %v718, %v714
        %v939 = vpack.c.b16 %v719, %v715
        %v940 = vpack.c.b16 %v720, %v716
        %v941 = vpack.c.b16 %v721, %v717
        %v942 = vpack.c.b16 %v726, %v722
        %v943 = vpack.c.b16 %v727, %v723
        %v944 = vpack.c.b16 %v728, %v724
        %v945 = vpack.c.b16 %v729, %v725
        %v946 = vpack.c.b16 %v734, %v730
        %v947 = vpack.c.b16 %v735, %v731
        %v948 = vpack.c.b16 %v736, %v732
        %v949 = vpack.c.b16 %v737, %v733
        %v950 = vpack.c.b16 %v742, %v738
        %v951 = vpack.c.b16 %v743, %v739
        %v952 = vpack.c.b16 %v744, %v740
        %v953 = vpack.c.b16 %v745, %v741
        %v954 = vpack.c.b16 %v750, %v746
        %v955 = vpack.c.b16 %v751, %v747
        %v956 = vpack.c.b16 %v752, %v748
        %v957 = vpack.c.b16 %v753, %v749
        %v958 = vpack.c.b16 %v758, %v754
        %v959 = vpack.c.b16 %v759, %v755
        %v960 = vpack.c.b16 %v760, %v756
        %v961 = vpack.c.b16 %v761, %v757
        %v962 = vpack.c.b16 %v766, %v762
        %v963 = vpack.c.b16 %v767, %v763
        %v964 = vpack.c.b16 %v768, %v764
        %v965 = vpack.c.b16 %v769, %v765
        %v966 = vpack.c.b16 %v774, %v770
        %v967 = vpack.c.b16 %v775, %v771
        %v968 = vpack.c.b16 %v776, %v772
        %v969 = vpack.c.b16 %v777, %v773
        %v970 = vpack.c.b16 %v782, %v778
        %v971 = vpack.c.b16 %v783, %v779
        %v972 = vpack.c.b16 %v784, %v780
        %v973 = vpack.c.b16 %v785, %v781
        %v974 = vpack.c.b16 %v790, %v786
        %v975 = vpack.c.b16 %v791, %v787
        %v976 = vpack.c.b16 %v792, %v788
        %v977 = vpack.c.b16 %v793, %v789
        %v978 = vpack.c.b16 %v798, %v794
        %v979 = vpack.c.b16 %v799, %v795
        %v980 = vpack.c.b16 %v800, %v796
        %v981 = vpack.c.b16 %v801, %v797
        %v982 = vpack.c.b16 %v806, %v802
        %v983 = vpack.c.b16 %v807, %v803
        %v984 = vpack.c.b16 %v808, %v804
        %v985 = vpack.c.b16 %v809, %v805
        %v986 = vpack.c.b16 %v814, %v810
        %v987 = vpack.c.b16 %v815, %v811
        %v988 = vpack.c.b16 %v816, %v812
        %v989 = vpack.c.b16 %v817, %v813
        %v990 = vpack.c.b16 %v822, %v818
        %v991 = vpack.c.b16 %v823, %v819
        %v992 = vpack.c.b16 %v824, %v820
        %v993 = vpack.c.b16 %v825, %v821
        %v994 = vpack.c.b16 %v830, %v826
        %v995 = vpack.c.b16 %v831, %v827
        %v996 = vpack.c.b16 %v832, %v828
        %v997 = vpack.c.b16 %v833, %v829
        %v998 = vpack.c.b16 %v838, %v834
        %v999 = vpack.c.b16 %v839, %v835
        %v1000 = vpack.c.b16 %v840, %v836
        %v1001 = vpack.c.b16 %v841, %v837
        %v1002 = vpack.c.b16 %v846, %v842
        %v1003 = vpack.c.b16 %v847, %v843
        %v1004 = vpack.c.b16 %v848, %v844
        %v1005 = vpack.c.b16 %v849, %v845
        %v1006 = vpack.c.b16 %v854, %v850
        %v1007 = vpack.c.b16 %v855, %v851
        %v1008 = vpack.c.b16 %v856, %v852
        %v1009 = vpack.c.b16 %v857, %v853
        %v1010 = vpack.c.b16 %v862, %v858
        %v1011 = vpack.c.b16 %v863, %v859
        %v1012 = vpack.c.b16 %v864, %v860
        %v1013 = vpack.c.b16 %v865, %v861
        %v1014 = vpack.c.b16 %v870, %v866
        %v1015 = vpack.c.b16 %v871, %v867
        %v1016 = vpack.c.b16 %v872, %v868
        %v1017 = vpack.c.b16 %v873, %v869
        %v1018 = vpack.c.b16 %v878, %v874
        %v1019 = vpack.c.b16 %v879, %v875
        %v1020 = vpack.c.b16 %v880, %v876
        %v1021 = vpack.c.b16 %v881, %v877
        %v1022 = vpack.c.b16 %v886, %v882
        %v1023 = vpack.c.b16 %v887, %v883
        %v1024 = vpack.c.b16 %v888, %v884
        %v1025 = vpack.c.b16 %v889, %v885
        %v1026 = vpack.c.b16 %v894, %v890
        %v1027 = vpack.c.b16 %v895, %v891
        %v1028 = vpack.c.b16 %v896, %v892
        %v1029 = vpack.c.b16 %v897, %v893
        %v1030 = vpack.c.b16 %v902, %v898
        %v1031 = vpack.c.b16 %v903, %v899
        %v1032 = vpack.c.b16 %v904, %v900
        %v1033 = vpack.c.b16 %v905, %v901
        %1162 = vmatpush.bf16.msra.mxu0 %v934
        %1163 = vmatpush.bf16.msra.mxu0 %v930
        %1164 = vmatpush.bf16.msra.mxu0 %v926
        %1165 = vmatpush.bf16.msra.mxu0 %v922
        %1166 = vmatpush.bf16.msra.mxu0 %v918
        %1167 = vmatpush.bf16.msra.mxu0 %v914
        %1168 = vmatpush.bf16.msra.mxu0 %v910
        %1169 = vmatpush.bf16.msra.mxu0 %v906
        %1170 = vmatmul.bf16.gmra.mxu0 %v380
        %v1171 = vpop.f32.mrf.mxu0
        %v1172 = vadd.f32 %v514, %v1171
        %v1173 = vpop.f32.mrf.mxu0
        %1174 = vdwg.mxu0
        %1175 = vmatpush.bf16.msra.mxu0 %v966
        %1176 = vmatpush.bf16.msra.mxu0 %v962
        %1177 = vmatpush.bf16.msra.mxu0 %v958
        %1178 = vmatpush.bf16.msra.mxu0 %v954
        %1179 = vmatpush.bf16.msra.mxu0 %v950
        %1180 = vmatpush.bf16.msra.mxu0 %v946
        %1181 = vmatpush.bf16.msra.mxu0 %v942
        %1182 = vmatpush.bf16.msra.mxu0 %v938
        %1183 = vmatmul.bf16.gmra.mxu0 %v381
        %v1184 = vpop.f32.mrf.mxu0
        %v1185 = vadd.f32 %v1172, %v1184
        %v1186 = vpop.f32.mrf.mxu0
        %1187 = vdwg.mxu0
        %1188 = vmatpush.bf16.msra.mxu0 %v998
        %1189 = vmatpush.bf16.msra.mxu0 %v994
        %1190 = vmatpush.bf16.msra.mxu0 %v990
        %1191 = vmatpush.bf16.msra.mxu0 %v986
        %1192 = vmatpush.bf16.msra.mxu0 %v982
        %1193 = vmatpush.bf16.msra.mxu0 %v978
        %1194 = vmatpush.bf16.msra.mxu0 %v974
        %1195 = vmatpush.bf16.msra.mxu0 %v970
        %1196 = vmatmul.bf16.gmra.mxu0 %v382
        %v1197 = vpop.f32.mrf.mxu0
        %v1198 = vadd.f32 %v1185, %v1197
        %v1199 = vpop.f32.mrf.mxu0
        %1200 = vdwg.mxu0
        %1201 = vmatpush.bf16.msra.mxu0 %v1030
        %1202 = vmatpush.bf16.msra.mxu0 %v1026
        %1203 = vmatpush.bf16.msra.mxu0 %v1022
        %1204 = vmatpush.bf16.msra.mxu0 %v1018
        %1205 = vmatpush.bf16.msra.mxu0 %v1014
        %1206 = vmatpush.bf16.msra.mxu0 %v1010
        %1207 = vmatpush.bf16.msra.mxu0 %v1006
        %1208 = vmatpush.bf16.msra.mxu0 %v1002
        %1209 = vmatmul.bf16.gmra.mxu0 %v383
        %v1210 = vpop.f32.mrf.mxu0
        %v1211 = vadd.f32 %v1198, %v1210
        %v1212 = vpop.f32.mrf.mxu0
        %1213 = vdwg.mxu0
        %1214 = vmatpush.bf16.msra.mxu0 %v935
        %1215 = vmatpush.bf16.msra.mxu0 %v931
        %1216 = vmatpush.bf16.msra.mxu0 %v927
        %1217 = vmatpush.bf16.msra.mxu0 %v923
        %1218 = vmatpush.bf16.msra.mxu0 %v919
        %1219 = vmatpush.bf16.msra.mxu0 %v915
        %1220 = vmatpush.bf16.msra.mxu0 %v911
        %1221 = vmatpush.bf16.msra.mxu0 %v907
        %1222 = vmatmul.bf16.gmra.mxu0 %v380
        %v1223 = vpop.f32.mrf.mxu0
        %v1224 = vadd.f32 %v515, %v1223
        %v1225 = vpop.f32.mrf.mxu0
        %1226 = vdwg.mxu0
        %1227 = vmatpush.bf16.msra.mxu0 %v967
        %1228 = vmatpush.bf16.msra.mxu0 %v963
        %1229 = vmatpush.bf16.msra.mxu0 %v959
        %1230 = vmatpush.bf16.msra.mxu0 %v955
        %1231 = vmatpush.bf16.msra.mxu0 %v951
        %1232 = vmatpush.bf16.msra.mxu0 %v947
        %1233 = vmatpush.bf16.msra.mxu0 %v943
        %1234 = vmatpush.bf16.msra.mxu0 %v939
        %1235 = vmatmul.bf16.gmra.mxu0 %v381
        %v1236 = vpop.f32.mrf.mxu0
        %v1237 = vadd.f32 %v1224, %v1236
        %v1238 = vpop.f32.mrf.mxu0
        %1239 = vdwg.mxu0
        %1240 = vmatpush.bf16.msra.mxu0 %v999
        %1241 = vmatpush.bf16.msra.mxu0 %v995
        %1242 = vmatpush.bf16.msra.mxu0 %v991
        %1243 = vmatpush.bf16.msra.mxu0 %v987
        %1244 = vmatpush.bf16.msra.mxu0 %v983
        %1245 = vmatpush.bf16.msra.mxu0 %v979
        %1246 = vmatpush.bf16.msra.mxu0 %v975
        %1247 = vmatpush.bf16.msra.mxu0 %v971
        %1248 = vmatmul.bf16.gmra.mxu0 %v382
        %v1249 = vpop.f32.mrf.mxu0
        %v1250 = vadd.f32 %v1237, %v1249
        %v1251 = vpop.f32.mrf.mxu0
        %1252 = vdwg.mxu0
        %1253 = vmatpush.bf16.msra.mxu0 %v1031
        %1254 = vmatpush.bf16.msra.mxu0 %v1027
        %1255 = vmatpush.bf16.msra.mxu0 %v1023
        %1256 = vmatpush.bf16.msra.mxu0 %v1019
        %1257 = vmatpush.bf16.msra.mxu0 %v1015
        %1258 = vmatpush.bf16.msra.mxu0 %v1011
        %1259 = vmatpush.bf16.msra.mxu0 %v1007
        %1260 = vmatpush.bf16.msra.mxu0 %v1003
        %1261 = vmatmul.bf16.gmra.mxu0 %v383
        %v1262 = vpop.f32.mrf.mxu0
        %v1263 = vadd.f32 %v1250, %v1262
        %v1264 = vpop.f32.mrf.mxu0
        %1265 = vdwg.mxu0
        %1266 = vmatpush.bf16.msra.mxu0 %v936
        %1267 = vmatpush.bf16.msra.mxu0 %v932
        %1268 = vmatpush.bf16.msra.mxu0 %v928
        %1269 = vmatpush.bf16.msra.mxu0 %v924
        %1270 = vmatpush.bf16.msra.mxu0 %v920
        %1271 = vmatpush.bf16.msra.mxu0 %v916
        %1272 = vmatpush.bf16.msra.mxu0 %v912
        %1273 = vmatpush.bf16.msra.mxu0 %v908
        %1274 = vmatmul.bf16.gmra.mxu0 %v380
        %v1275 = vpop.f32.mrf.mxu0
        %v1276 = vadd.f32 %v516, %v1275
        %v1277 = vpop.f32.mrf.mxu0
        %1278 = vdwg.mxu0
        %1279 = vmatpush.bf16.msra.mxu0 %v968
        %1280 = vmatpush.bf16.msra.mxu0 %v964
        %1281 = vmatpush.bf16.msra.mxu0 %v960
        %1282 = vmatpush.bf16.msra.mxu0 %v956
        %1283 = vmatpush.bf16.msra.mxu0 %v952
        %1284 = vmatpush.bf16.msra.mxu0 %v948
        %1285 = vmatpush.bf16.msra.mxu0 %v944
        %1286 = vmatpush.bf16.msra.mxu0 %v940
        %1287 = vmatmul.bf16.gmra.mxu0 %v381
        %v1288 = vpop.f32.mrf.mxu0
        %v1289 = vadd.f32 %v1276, %v1288
        %v1290 = vpop.f32.mrf.mxu0
        %1291 = vdwg.mxu0
        %1292 = vmatpush.bf16.msra.mxu0 %v1000
        %1293 = vmatpush.bf16.msra.mxu0 %v996
        %1294 = vmatpush.bf16.msra.mxu0 %v992
        %1295 = vmatpush.bf16.msra.mxu0 %v988
        %1296 = vmatpush.bf16.msra.mxu0 %v984
        %1297 = vmatpush.bf16.msra.mxu0 %v980
        %1298 = vmatpush.bf16.msra.mxu0 %v976
        %1299 = vmatpush.bf16.msra.mxu0 %v972
        %1300 = vmatmul.bf16.gmra.mxu0 %v382
        %v1301 = vpop.f32.mrf.mxu0
        %v1302 = vadd.f32 %v1289, %v1301
        %v1303 = vpop.f32.mrf.mxu0
        %1304 = vdwg.mxu0
        %1305 = vmatpush.bf16.msra.mxu0 %v1032
        %1306 = vmatpush.bf16.msra.mxu0 %v1028
        %1307 = vmatpush.bf16.msra.mxu0 %v1024
        %1308 = vmatpush.bf16.msra.mxu0 %v1020
        %1309 = vmatpush.bf16.msra.mxu0 %v1016
        %1310 = vmatpush.bf16.msra.mxu0 %v1012
        %1311 = vmatpush.bf16.msra.mxu0 %v1008
        %1312 = vmatpush.bf16.msra.mxu0 %v1004
        %1313 = vmatmul.bf16.gmra.mxu0 %v383
        %v1314 = vpop.f32.mrf.mxu0
        %v1315 = vadd.f32 %v1302, %v1314
        %v1316 = vpop.f32.mrf.mxu0
        %1317 = vdwg.mxu0
        %1318 = vmatpush.bf16.msra.mxu0 %v937
        %1319 = vmatpush.bf16.msra.mxu0 %v933
        %1320 = vmatpush.bf16.msra.mxu0 %v929
        %1321 = vmatpush.bf16.msra.mxu0 %v925
        %1322 = vmatpush.bf16.msra.mxu0 %v921
        %1323 = vmatpush.bf16.msra.mxu0 %v917
        %1324 = vmatpush.bf16.msra.mxu0 %v913
        %1325 = vmatpush.bf16.msra.mxu0 %v909
        %1326 = vmatmul.bf16.gmra.mxu0 %v380
        %v1327 = vpop.f32.mrf.mxu0
        %v1328 = vadd.f32 %v517, %v1327
        %v1329 = vpop.f32.mrf.mxu0
        %1330 = vdwg.mxu0
        %1331 = vmatpush.bf16.msra.mxu0 %v969
        %1332 = vmatpush.bf16.msra.mxu0 %v965
        %1333 = vmatpush.bf16.msra.mxu0 %v961
        %1334 = vmatpush.bf16.msra.mxu0 %v957
        %1335 = vmatpush.bf16.msra.mxu0 %v953
        %1336 = vmatpush.bf16.msra.mxu0 %v949
        %1337 = vmatpush.bf16.msra.mxu0 %v945
        %1338 = vmatpush.bf16.msra.mxu0 %v941
        %1339 = vmatmul.bf16.gmra.mxu0 %v381
        %v1340 = vpop.f32.mrf.mxu0
        %v1341 = vadd.f32 %v1328, %v1340
        %v1342 = vpop.f32.mrf.mxu0
        %1343 = vdwg.mxu0
        %1344 = vmatpush.bf16.msra.mxu0 %v1001
        %1345 = vmatpush.bf16.msra.mxu0 %v997
        %1346 = vmatpush.bf16.msra.mxu0 %v993
        %1347 = vmatpush.bf16.msra.mxu0 %v989
        %1348 = vmatpush.bf16.msra.mxu0 %v985
        %1349 = vmatpush.bf16.msra.mxu0 %v981
        %1350 = vmatpush.bf16.msra.mxu0 %v977
        %1351 = vmatpush.bf16.msra.mxu0 %v973
        %1352 = vmatmul.bf16.gmra.mxu0 %v382
        %v1353 = vpop.f32.mrf.mxu0
        %v1354 = vadd.f32 %v1341, %v1353
        %v1355 = vpop.f32.mrf.mxu0
        %1356 = vdwg.mxu0
        %1357 = vmatpush.bf16.msra.mxu0 %v1033
        %1358 = vmatpush.bf16.msra.mxu0 %v1029
        %1359 = vmatpush.bf16.msra.mxu0 %v1025
        %1360 = vmatpush.bf16.msra.mxu0 %v1021
        %1361 = vmatpush.bf16.msra.mxu0 %v1017
        %1362 = vmatpush.bf16.msra.mxu0 %v1013
        %1363 = vmatpush.bf16.msra.mxu0 %v1009
        %1364 = vmatpush.bf16.msra.mxu0 %v1005
        %1365 = vmatmul.bf16.gmra.mxu0 %v383
        %v1366 = vpop.f32.mrf.mxu0
        %v1367 = vadd.f32 %v1354, %v1366
        %v1368 = vpop.f32.mrf.mxu0
        %1369 = vdwg.mxu0
        %v1370 = vmax.f32 %v1211, 0.0
        %v1371 = vmax.f32 %v1263, 0.0
        %v1372 = vmax.f32 %v1315, 0.0
        %v1373 = vmax.f32 %v1367, 0.0
        %v1374 = vpack.c.bf16 %v1370, %v1370
        %v1375 = vpack.c.bf16 %v1371, %v1371
        %v1376 = vpack.c.bf16 %v1372, %v1372
        %v1377 = vpack.c.bf16 %v1373, %v1373
        %v1378 = vld [vmem:[#allocation8] sm:$0xff]
        %v1379 = vld [vmem:[#allocation8 + $0x8] sm:$0xff]
        %v1380 = vld [vmem:[#allocation8 + $0x10] sm:$0xff]
        %v1381 = vld [vmem:[#allocation8 + $0x18] sm:$0xff]
        %v1382 = vld [vmem:[#allocation8 + $0x20] sm:$0xff]
        %v1383 = vld [vmem:[#allocation8 + $0x28] sm:$0xff]
        %v1384 = vld [vmem:[#allocation8 + $0x30] sm:$0xff]
        %v1385 = vld [vmem:[#allocation8 + $0x38] sm:$0xff]
        %v1386 = vld [vmem:[#allocation8 + $0x40] sm:$0xff]
        %v1387 = vld [vmem:[#allocation8 + $0x48] sm:$0xff]
        %v1388 = vld [vmem:[#allocation8 + $0x50] sm:$0xff]
        %v1389 = vld [vmem:[#allocation8 + $0x58] sm:$0xff]
        %v1390 = vld [vmem:[#allocation8 + $0x60] sm:$0xff]
        %v1391 = vld [vmem:[#allocation8 + $0x68] sm:$0xff]
        %v1392 = vld [vmem:[#allocation8 + $0x70] sm:$0xff]
        %v1393 = vld [vmem:[#allocation8 + $0x78] sm:$0xff]
        %v1394 = vld [vmem:[#allocation8 + $0x80] sm:$0xff]
        %v1395 = vld [vmem:[#allocation8 + $0x88] sm:$0xff]
        %v1396 = vld [vmem:[#allocation8 + $0x90] sm:$0xff]
        %v1397 = vld [vmem:[#allocation8 + $0x98] sm:$0xff]
        %v1398 = vld [vmem:[#allocation8 + $0xa0] sm:$0xff]
        %v1399 = vld [vmem:[#allocation8 + $0xa8] sm:$0xff]
        %v1400 = vld [vmem:[#allocation8 + $0xb0] sm:$0xff]
        %v1401 = vld [vmem:[#allocation8 + $0xb8] sm:$0xff]
        %v1402 = vld [vmem:[#allocation8 + $0xc0] sm:$0xff]
        %v1403 = vld [vmem:[#allocation8 + $0xc8] sm:$0xff]
        %v1404 = vld [vmem:[#allocation8 + $0xd0] sm:$0xff]
        %v1405 = vld [vmem:[#allocation8 + $0xd8] sm:$0xff]
        %v1406 = vld [vmem:[#allocation8 + $0xe0] sm:$0xff]
        %v1407 = vld [vmem:[#allocation8 + $0xe8] sm:$0xff]
        %v1408 = vld [vmem:[#allocation8 + $0xf0] sm:$0xff]
        %v1409 = vld [vmem:[#allocation8 + $0xf8] sm:$0xff]
        %v1410 = vld [vmem:[#allocation8 + $0x100] sm:$0xff]
        %v1411 = vld [vmem:[#allocation8 + $0x108] sm:$0xff]
        %v1412 = vld [vmem:[#allocation8 + $0x110] sm:$0xff]
        %v1413 = vld [vmem:[#allocation8 + $0x118] sm:$0xff]
        %v1414 = vld [vmem:[#allocation8 + $0x120] sm:$0xff]
        %v1415 = vld [vmem:[#allocation8 + $0x128] sm:$0xff]
        %v1416 = vld [vmem:[#allocation8 + $0x130] sm:$0xff]
        %v1417 = vld [vmem:[#allocation8 + $0x138] sm:$0xff]
        %v1418 = vld [vmem:[#allocation8 + $0x140] sm:$0xff]
        %v1419 = vld [vmem:[#allocation8 + $0x148] sm:$0xff]
        %v1420 = vld [vmem:[#allocation8 + $0x150] sm:$0xff]
        %v1421 = vld [vmem:[#allocation8 + $0x158] sm:$0xff]
        %v1422 = vld [vmem:[#allocation8 + $0x160] sm:$0xff]
        %v1423 = vld [vmem:[#allocation8 + $0x168] sm:$0xff]
        %v1424 = vld [vmem:[#allocation8 + $0x170] sm:$0xff]
        %v1425 = vld [vmem:[#allocation8 + $0x178] sm:$0xff]
        %v1426 = vld [vmem:[#allocation8 + $0x180] sm:$0xff]
        %v1427 = vld [vmem:[#allocation8 + $0x188] sm:$0xff]
        %v1428 = vld [vmem:[#allocation8 + $0x190] sm:$0xff]
        %v1429 = vld [vmem:[#allocation8 + $0x198] sm:$0xff]
        %v1430 = vld [vmem:[#allocation8 + $0x1a0] sm:$0xff]
        %v1431 = vld [vmem:[#allocation8 + $0x1a8] sm:$0xff]
        %v1432 = vld [vmem:[#allocation8 + $0x1b0] sm:$0xff]
        %v1433 = vld [vmem:[#allocation8 + $0x1b8] sm:$0xff]
        %v1434 = vld [vmem:[#allocation8 + $0x1c0] sm:$0xff]
        %v1435 = vld [vmem:[#allocation8 + $0x1c8] sm:$0xff]
        %v1436 = vld [vmem:[#allocation8 + $0x1d0] sm:$0xff]
        %v1437 = vld [vmem:[#allocation8 + $0x1d8] sm:$0xff]
        %v1438 = vld [vmem:[#allocation8 + $0x1e0] sm:$0xff]
        %v1439 = vld [vmem:[#allocation8 + $0x1e8] sm:$0xff]
        %v1440 = vld [vmem:[#allocation8 + $0x1f0] sm:$0xff]
        %v1441 = vld [vmem:[#allocation8 + $0x1f8] sm:$0xff]
        %v1442 = vld [vmem:[%s4] sm:$0x3]
        %v1444 = vperm.slane %v1442, 0
        %v1445 = vperm.slane %v1442, 1
        %v1512 = vunpack.c.l.b16 %v1378
        %v1513 = vunpack.c.h.b16 %v1378
        %v1514 = vunpack.c.l.b16 %v1379
        %v1515 = vunpack.c.h.b16 %v1379
        %v1516 = vunpack.c.l.b16 %v1380
        %v1517 = vunpack.c.h.b16 %v1380
        %v1518 = vunpack.c.l.b16 %v1381
        %v1519 = vunpack.c.h.b16 %v1381
        %v1520 = vunpack.c.l.b16 %v1382
        %v1521 = vunpack.c.h.b16 %v1382
        %v1522 = vunpack.c.l.b16 %v1383
        %v1523 = vunpack.c.h.b16 %v1383
        %v1524 = vunpack.c.l.b16 %v1384
        %v1525 = vunpack.c.h.b16 %v1384
        %v1526 = vunpack.c.l.b16 %v1385
        %v1527 = vunpack.c.h.b16 %v1385
        %v1528 = vunpack.c.l.b16 %v1386
        %v1529 = vunpack.c.h.b16 %v1386
        %v1530 = vunpack.c.l.b16 %v1387
        %v1531 = vunpack.c.h.b16 %v1387
        %v1532 = vunpack.c.l.b16 %v1388
        %v1533 = vunpack.c.h.b16 %v1388
        %v1534 = vunpack.c.l.b16 %v1389
        %v1535 = vunpack.c.h.b16 %v1389
        %v1536 = vunpack.c.l.b16 %v1390
        %v1537 = vunpack.c.h.b16 %v1390
        %v1538 = vunpack.c.l.b16 %v1391
        %v1539 = vunpack.c.h.b16 %v1391
        %v1540 = vunpack.c.l.b16 %v1392
        %v1541 = vunpack.c.h.b16 %v1392
        %v1542 = vunpack.c.l.b16 %v1393
        %v1543 = vunpack.c.h.b16 %v1393
        %v1544 = vunpack.c.l.b16 %v1394
        %v1545 = vunpack.c.h.b16 %v1394
        %v1546 = vunpack.c.l.b16 %v1395
        %v1547 = vunpack.c.h.b16 %v1395
        %v1548 = vunpack.c.l.b16 %v1396
        %v1549 = vunpack.c.h.b16 %v1396
        %v1550 = vunpack.c.l.b16 %v1397
        %v1551 = vunpack.c.h.b16 %v1397
        %v1552 = vunpack.c.l.b16 %v1398
        %v1553 = vunpack.c.h.b16 %v1398
        %v1554 = vunpack.c.l.b16 %v1399
        %v1555 = vunpack.c.h.b16 %v1399
        %v1556 = vunpack.c.l.b16 %v1400
        %v1557 = vunpack.c.h.b16 %v1400
        %v1558 = vunpack.c.l.b16 %v1401
        %v1559 = vunpack.c.h.b16 %v1401
        %v1560 = vunpack.c.l.b16 %v1402
        %v1561 = vunpack.c.h.b16 %v1402
        %v1562 = vunpack.c.l.b16 %v1403
        %v1563 = vunpack.c.h.b16 %v1403
        %v1564 = vunpack.c.l.b16 %v1404
        %v1565 = vunpack.c.h.b16 %v1404
        %v1566 = vunpack.c.l.b16 %v1405
        %v1567 = vunpack.c.h.b16 %v1405
        %v1568 = vunpack.c.l.b16 %v1406
        %v1569 = vunpack.c.h.b16 %v1406
        %v1570 = vunpack.c.l.b16 %v1407
        %v1571 = vunpack.c.h.b16 %v1407
        %v1572 = vunpack.c.l.b16 %v1408
        %v1573 = vunpack.c.h.b16 %v1408
        %v1574 = vunpack.c.l.b16 %v1409
        %v1575 = vunpack.c.h.b16 %v1409
        %v1576 = vunpack.c.l.b16 %v1410
        %v1577 = vunpack.c.h.b16 %v1410
        %v1578 = vunpack.c.l.b16 %v1411
        %v1579 = vunpack.c.h.b16 %v1411
        %v1580 = vunpack.c.l.b16 %v1412
        %v1581 = vunpack.c.h.b16 %v1412
        %v1582 = vunpack.c.l.b16 %v1413
        %v1583 = vunpack.c.h.b16 %v1413
        %v1584 = vunpack.c.l.b16 %v1414
        %v1585 = vunpack.c.h.b16 %v1414
        %v1586 = vunpack.c.l.b16 %v1415
        %v1587 = vunpack.c.h.b16 %v1415
        %v1588 = vunpack.c.l.b16 %v1416
        %v1589 = vunpack.c.h.b16 %v1416
        %v1590 = vunpack.c.l.b16 %v1417
        %v1591 = vunpack.c.h.b16 %v1417
        %v1592 = vunpack.c.l.b16 %v1418
        %v1593 = vunpack.c.h.b16 %v1418
        %v1594 = vunpack.c.l.b16 %v1419
        %v1595 = vunpack.c.h.b16 %v1419
        %v1596 = vunpack.c.l.b16 %v1420
        %v1597 = vunpack.c.h.b16 %v1420
        %v1598 = vunpack.c.l.b16 %v1421
        %v1599 = vunpack.c.h.b16 %v1421
        %v1600 = vunpack.c.l.b16 %v1422
        %v1601 = vunpack.c.h.b16 %v1422
        %v1602 = vunpack.c.l.b16 %v1423
        %v1603 = vunpack.c.h.b16 %v1423
        %v1604 = vunpack.c.l.b16 %v1424
        %v1605 = vunpack.c.h.b16 %v1424
        %v1606 = vunpack.c.l.b16 %v1425
        %v1607 = vunpack.c.h.b16 %v1425
        %v1608 = vunpack.c.l.b16 %v1426
        %v1609 = vunpack.c.h.b16 %v1426
        %v1610 = vunpack.c.l.b16 %v1427
        %v1611 = vunpack.c.h.b16 %v1427
        %v1612 = vunpack.c.l.b16 %v1428
        %v1613 = vunpack.c.h.b16 %v1428
        %v1614 = vunpack.c.l.b16 %v1429
        %v1615 = vunpack.c.h.b16 %v1429
        %v1616 = vunpack.c.l.b16 %v1430
        %v1617 = vunpack.c.h.b16 %v1430
        %v1618 = vunpack.c.l.b16 %v1431
        %v1619 = vunpack.c.h.b16 %v1431
        %v1620 = vunpack.c.l.b16 %v1432
        %v1621 = vunpack.c.h.b16 %v1432
        %v1622 = vunpack.c.l.b16 %v1433
        %v1623 = vunpack.c.h.b16 %v1433
        %v1624 = vunpack.c.l.b16 %v1434
        %v1625 = vunpack.c.h.b16 %v1434
        %v1626 = vunpack.c.l.b16 %v1435
        %v1627 = vunpack.c.h.b16 %v1435
        %v1628 = vunpack.c.l.b16 %v1436
        %v1629 = vunpack.c.h.b16 %v1436
        %v1630 = vunpack.c.l.b16 %v1437
        %v1631 = vunpack.c.h.b16 %v1437
        %v1632 = vunpack.c.l.b16 %v1438
        %v1633 = vunpack.c.h.b16 %v1438
        %v1634 = vunpack.c.l.b16 %v1439
        %v1635 = vunpack.c.h.b16 %v1439
        %v1636 = vunpack.c.l.b16 %v1440
        %v1637 = vunpack.c.h.b16 %v1440
        %v1638 = vunpack.c.l.b16 %v1441
        %v1639 = vunpack.c.h.b16 %v1441
        %v1640 = vpack.c.b16 %v1514, %v1512
        %v1641 = vpack.c.b16 %v1515, %v1513
        %v1642 = vpack.c.b16 %v1518, %v1516
        %v1643 = vpack.c.b16 %v1519, %v1517
        %v1644 = vpack.c.b16 %v1522, %v1520
        %v1645 = vpack.c.b16 %v1523, %v1521
        %v1646 = vpack.c.b16 %v1526, %v1524
        %v1647 = vpack.c.b16 %v1527, %v1525
        %v1648 = vpack.c.b16 %v1530, %v1528
        %v1649 = vpack.c.b16 %v1531, %v1529
        %v1650 = vpack.c.b16 %v1534, %v1532
        %v1651 = vpack.c.b16 %v1535, %v1533
        %v1652 = vpack.c.b16 %v1538, %v1536
        %v1653 = vpack.c.b16 %v1539, %v1537
        %v1654 = vpack.c.b16 %v1542, %v1540
        %v1655 = vpack.c.b16 %v1543, %v1541
        %v1656 = vpack.c.b16 %v1546, %v1544
        %v1657 = vpack.c.b16 %v1547, %v1545
        %v1658 = vpack.c.b16 %v1550, %v1548
        %v1659 = vpack.c.b16 %v1551, %v1549
        %v1660 = vpack.c.b16 %v1554, %v1552
        %v1661 = vpack.c.b16 %v1555, %v1553
        %v1662 = vpack.c.b16 %v1558, %v1556
        %v1663 = vpack.c.b16 %v1559, %v1557
        %v1664 = vpack.c.b16 %v1562, %v1560
        %v1665 = vpack.c.b16 %v1563, %v1561
        %v1666 = vpack.c.b16 %v1566, %v1564
        %v1667 = vpack.c.b16 %v1567, %v1565
        %v1668 = vpack.c.b16 %v1570, %v1568
        %v1669 = vpack.c.b16 %v1571, %v1569
        %v1670 = vpack.c.b16 %v1574, %v1572
        %v1671 = vpack.c.b16 %v1575, %v1573
        %v1672 = vpack.c.b16 %v1578, %v1576
        %v1673 = vpack.c.b16 %v1579, %v1577
        %v1674 = vpack.c.b16 %v1582, %v1580
        %v1675 = vpack.c.b16 %v1583, %v1581
        %v1676 = vpack.c.b16 %v1586, %v1584
        %v1677 = vpack.c.b16 %v1587, %v1585
        %v1678 = vpack.c.b16 %v1590, %v1588
        %v1679 = vpack.c.b16 %v1591, %v1589
        %v1680 = vpack.c.b16 %v1594, %v1592
        %v1681 = vpack.c.b16 %v1595, %v1593
        %v1682 = vpack.c.b16 %v1598, %v1596
        %v1683 = vpack.c.b16 %v1599, %v1597
        %v1684 = vpack.c.b16 %v1602, %v1600
        %v1685 = vpack.c.b16 %v1603, %v1601
        %v1686 = vpack.c.b16 %v1606, %v1604
        %v1687 = vpack.c.b16 %v1607, %v1605
        %v1688 = vpack.c.b16 %v1610, %v1608
        %v1689 = vpack.c.b16 %v1611, %v1609
        %v1690 = vpack.c.b16 %v1614, %v1612
        %v1691 = vpack.c.b16 %v1615, %v1613
        %v1692 = vpack.c.b16 %v1618, %v1616
        %v1693 = vpack.c.b16 %v1619, %v1617
        %v1694 = vpack.c.b16 %v1622, %v1620
        %v1695 = vpack.c.b16 %v1623, %v1621
        %v1696 = vpack.c.b16 %v1626, %v1624
        %v1697 = vpack.c.b16 %v1627, %v1625
        %v1698 = vpack.c.b16 %v1630, %v1628
        %v1699 = vpack.c.b16 %v1631, %v1629
        %v1700 = vpack.c.b16 %v1634, %v1632
        %v1701 = vpack.c.b16 %v1635, %v1633
        %v1702 = vpack.c.b16 %v1638, %v1636
        %v1703 = vpack.c.b16 %v1639, %v1637
        %1768 = vmatpush.bf16.msra.mxu0 %v1654
        %1769 = vmatpush.bf16.msra.mxu0 %v1652
        %1770 = vmatpush.bf16.msra.mxu0 %v1650
        %1771 = vmatpush.bf16.msra.mxu0 %v1648
        %1772 = vmatpush.bf16.msra.mxu0 %v1646
        %1773 = vmatpush.bf16.msra.mxu0 %v1644
        %1774 = vmatpush.bf16.msra.mxu0 %v1642
        %1775 = vmatpush.bf16.msra.mxu0 %v1640
        %1776 = vmatmul.bf16.gmra.mxu0 %v1374
        %v1777 = vpop.f32.mrf.mxu0
        %v1778 = vadd.f32 %v1444, %v1777
        %v1779 = vpop.f32.mrf.mxu0
        %1780 = vdwg.mxu0
        %1781 = vmatpush.bf16.msra.mxu0 %v1670
        %1782 = vmatpush.bf16.msra.mxu0 %v1668
        %1783 = vmatpush.bf16.msra.mxu0 %v1666
        %1784 = vmatpush.bf16.msra.mxu0 %v1664
        %1785 = vmatpush.bf16.msra.mxu0 %v1662
        %1786 = vmatpush.bf16.msra.mxu0 %v1660
        %1787 = vmatpush.bf16.msra.mxu0 %v1658
        %1788 = vmatpush.bf16.msra.mxu0 %v1656
        %1789 = vmatmul.bf16.gmra.mxu0 %v1375
        %v1790 = vpop.f32.mrf.mxu0
        %v1791 = vadd.f32 %v1778, %v1790
        %v1792 = vpop.f32.mrf.mxu0
        %1793 = vdwg.mxu0
        %1794 = vmatpush.bf16.msra.mxu0 %v1686
        %1795 = vmatpush.bf16.msra.mxu0 %v1684
        %1796 = vmatpush.bf16.msra.mxu0 %v1682
        %1797 = vmatpush.bf16.msra.mxu0 %v1680
        %1798 = vmatpush.bf16.msra.mxu0 %v1678
        %1799 = vmatpush.bf16.msra.mxu0 %v1676
        %1800 = vmatpush.bf16.msra.mxu0 %v1674
        %1801 = vmatpush.bf16.msra.mxu0 %v1672
        %1802 = vmatmul.bf16.gmra.mxu0 %v1376
        %v1803 = vpop.f32.mrf.mxu0
        %v1804 = vadd.f32 %v1791, %v1803
        %v1805 = vpop.f32.mrf.mxu0
        %1806 = vdwg.mxu0
        %1807 = vmatpush.bf16.msra.mxu0 %v1702
        %1808 = vmatpush.bf16.msra.mxu0 %v1700
        %1809 = vmatpush.bf16.msra.mxu0 %v1698
        %1810 = vmatpush.bf16.msra.mxu0 %v1696
        %1811 = vmatpush.bf16.msra.mxu0 %v1694
        %1812 = vmatpush.bf16.msra.mxu0 %v1692
        %1813 = vmatpush.bf16.msra.mxu0 %v1690
        %1814 = vmatpush.bf16.msra.mxu0 %v1688
        %1815 = vmatmul.bf16.gmra.mxu0 %v1377
        %v1816 = vpop.f32.mrf.mxu0
        %v1817 = vadd.f32 %v1804, %v1816
        %v1818 = vpop.f32.mrf.mxu0
        %1819 = vdwg.mxu0
        %1820 = vmatpush.bf16.msra.mxu0 %v1655
        %1821 = vmatpush.bf16.msra.mxu0 %v1653
        %1822 = vmatpush.bf16.msra.mxu0 %v1651
        %1823 = vmatpush.bf16.msra.mxu0 %v1649
        %1824 = vmatpush.bf16.msra.mxu0 %v1647
        %1825 = vmatpush.bf16.msra.mxu0 %v1645
        %1826 = vmatpush.bf16.msra.mxu0 %v1643
        %1827 = vmatpush.bf16.msra.mxu0 %v1641
        %1828 = vmatmul.bf16.gmra.mxu0 %v1374
        %v1829 = vpop.f32.mrf.mxu0
        %v1830 = vadd.f32 %v1445, %v1829
        %v1831 = vpop.f32.mrf.mxu0
        %1832 = vdwg.mxu0
        %1833 = vmatpush.bf16.msra.mxu0 %v1671
        %1834 = vmatpush.bf16.msra.mxu0 %v1669
        %1835 = vmatpush.bf16.msra.mxu0 %v1667
        %1836 = vmatpush.bf16.msra.mxu0 %v1665
        %1837 = vmatpush.bf16.msra.mxu0 %v1663
        %1838 = vmatpush.bf16.msra.mxu0 %v1661
        %1839 = vmatpush.bf16.msra.mxu0 %v1659
        %1840 = vmatpush.bf16.msra.mxu0 %v1657
        %1841 = vmatmul.bf16.gmra.mxu0 %v1375
        %v1842 = vpop.f32.mrf.mxu0
        %v1843 = vadd.f32 %v1830, %v1842
        %v1844 = vpop.f32.mrf.mxu0
        %1845 = vdwg.mxu0
        %1846 = vmatpush.bf16.msra.mxu0 %v1687
        %1847 = vmatpush.bf16.msra.mxu0 %v1685
        %1848 = vmatpush.bf16.msra.mxu0 %v1683
        %1849 = vmatpush.bf16.msra.mxu0 %v1681
        %1850 = vmatpush.bf16.msra.mxu0 %v1679
        %1851 = vmatpush.bf16.msra.mxu0 %v1677
        %1852 = vmatpush.bf16.msra.mxu0 %v1675
        %1853 = vmatpush.bf16.msra.mxu0 %v1673
        %1854 = vmatmul.bf16.gmra.mxu0 %v1376
        %v1855 = vpop.f32.mrf.mxu0
        %v1856 = vadd.f32 %v1843, %v1855
        %v1857 = vpop.f32.mrf.mxu0
        %1858 = vdwg.mxu0
        %1859 = vmatpush.bf16.msra.mxu0 %v1703
        %1860 = vmatpush.bf16.msra.mxu0 %v1701
        %1861 = vmatpush.bf16.msra.mxu0 %v1699
        %1862 = vmatpush.bf16.msra.mxu0 %v1697
        %1863 = vmatpush.bf16.msra.mxu0 %v1695
        %1864 = vmatpush.bf16.msra.mxu0 %v1693
        %1865 = vmatpush.bf16.msra.mxu0 %v1691
        %1866 = vmatpush.bf16.msra.mxu0 %v1689
        %1867 = vmatmul.bf16.gmra.mxu0 %v1377
        %v1868 = vpop.f32.mrf.mxu0
        %v1869 = vadd.f32 %v1856, %v1868
        %v1870 = vpop.f32.mrf.mxu0
        %1871 = vdwg.mxu0
        %v1872 = vpack.c.bf16 %v1817, %v1817
        %v1873 = vpack.c.bf16 %v1869, %v1869
        %v1874 = vld [vmem:[#allocation10] sm:$0xff]
        %v1875 = vld [vmem:[#allocation10 + $0x8] sm:$0xff]
        %v1876 = vld [vmem:[#allocation10 + $0x10] sm:$0xff]
        %v1877 = vld [vmem:[#allocation10 + $0x18] sm:$0xff]
        %v1878 = vld [vmem:[#allocation10 + $0x20] sm:$0xff]
        %v1879 = vld [vmem:[#allocation10 + $0x28] sm:$0xf]
        %v1880 = vld [vmem:[#allocation10 + $0x2c] sm:$0xff]
        %v1881 = vld [vmem:[#allocation10 + $0x34] sm:$0xff]
        %v1882 = vld [vmem:[#allocation10 + $0x3c] sm:$0xff]
        %v1883 = vld [vmem:[#allocation10 + $0x44] sm:$0xff]
        %v1884 = vld [vmem:[#allocation10 + $0x4c] sm:$0xff]
        %v1885 = vld [vmem:[#allocation10 + $0x54] sm:$0xf]
        %v1886 = vld [vmem:[#allocation10 + $0x58] sm:$0xff]
        %v1887 = vld [vmem:[#allocation10 + $0x60] sm:$0xff]
        %v1888 = vld [vmem:[#allocation10 + $0x68] sm:$0xff]
        %v1889 = vld [vmem:[#allocation10 + $0x70] sm:$0xff]
        %v1890 = vld [vmem:[#allocation10 + $0x78] sm:$0xff]
        %v1891 = vld [vmem:[#allocation10 + $0x80] sm:$0xf]
        %v1892 = vld [vmem:[#allocation10 + $0x84] sm:$0xff]
        %v1893 = vld [vmem:[#allocation10 + $0x8c] sm:$0xff]
        %v1894 = vld [vmem:[#allocation10 + $0x94] sm:$0xff]
        %v1895 = vld [vmem:[#allocation10 + $0x9c] sm:$0xff]
        %v1896 = vld [vmem:[#allocation10 + $0xa4] sm:$0xff]
        %v1897 = vld [vmem:[#allocation10 + $0xac] sm:$0xf]
        %v1898 = vld [vmem:[#allocation10 + $0xb0] sm:$0xff]
        %v1899 = vld [vmem:[#allocation10 + $0xb8] sm:$0xff]
        %v1900 = vld [vmem:[#allocation10 + $0xc0] sm:$0xff]
        %v1901 = vld [vmem:[#allocation10 + $0xc8] sm:$0xff]
        %v1902 = vld [vmem:[#allocation10 + $0xd0] sm:$0xff]
        %v1903 = vld [vmem:[#allocation10 + $0xd8] sm:$0xf]
        %v1904 = vld [vmem:[#allocation10 + $0xdc] sm:$0xff]
        %v1905 = vld [vmem:[#allocation10 + $0xe4] sm:$0xff]
        %v1906 = vld [vmem:[#allocation10 + $0xec] sm:$0xff]
        %v1907 = vld [vmem:[#allocation10 + $0xf4] sm:$0xff]
        %v1908 = vld [vmem:[#allocation10 + $0xfc] sm:$0xff]
        %v1909 = vld [vmem:[#allocation10 + $0x104] sm:$0xf]
        %v1910 = vld [vmem:[#allocation10 + $0x108] sm:$0xff]
        %v1911 = vld [vmem:[#allocation10 + $0x110] sm:$0xff]
        %v1912 = vld [vmem:[#allocation10 + $0x118] sm:$0xff]
        %v1913 = vld [vmem:[#allocation10 + $0x120] sm:$0xff]
        %v1914 = vld [vmem:[#allocation10 + $0x128] sm:$0xff]
        %v1915 = vld [vmem:[#allocation10 + $0x130] sm:$0xf]
        %v1916 = vld [vmem:[#allocation10 + $0x134] sm:$0xff]
        %v1917 = vld [vmem:[#allocation10 + $0x13c] sm:$0xff]
        %v1918 = vld [vmem:[#allocation10 + $0x144] sm:$0xff]
        %v1919 = vld [vmem:[#allocation10 + $0x14c] sm:$0xff]
        %v1920 = vld [vmem:[#allocation10 + $0x154] sm:$0xff]
        %v1921 = vld [vmem:[#allocation10 + $0x15c] sm:$0xf]
        %v1922 = vld [vmem:[#allocation10 + $0x160] sm:$0xff]
        %v1923 = vld [vmem:[#allocation10 + $0x168] sm:$0xff]
        %v1924 = vld [vmem:[#allocation10 + $0x170] sm:$0xff]
        %v1925 = vld [vmem:[#allocation10 + $0x178] sm:$0xff]
        %v1926 = vld [vmem:[#allocation10 + $0x180] sm:$0xff]
        %v1927 = vld [vmem:[#allocation10 + $0x188] sm:$0xf]
        %v1928 = vld [vmem:[#allocation10 + $0x18c] sm:$0xff]
        %v1929 = vld [vmem:[#allocation10 + $0x194] sm:$0xff]
        %v1930 = vld [vmem:[#allocation10 + $0x19c] sm:$0xff]
        %v1931 = vld [vmem:[#allocation10 + $0x1a4] sm:$0xff]
        %v1932 = vld [vmem:[#allocation10 + $0x1ac] sm:$0xff]
        %v1933 = vld [vmem:[#allocation10 + $0x1b4] sm:$0xf]
        %v1934 = vld [vmem:[#allocation10 + $0x1b8] sm:$0xff]
        %v1935 = vld [vmem:[#allocation10 + $0x1c0] sm:$0xff]
        %v1936 = vld [vmem:[#allocation10 + $0x1c8] sm:$0xff]
        %v1937 = vld [vmem:[#allocation10 + $0x1d0] sm:$0xff]
        %v1938 = vld [vmem:[#allocation10 + $0x1d8] sm:$0xff]
        %v1939 = vld [vmem:[#allocation10 + $0x1e0] sm:$0xf]
        %v1940 = vld [vmem:[#allocation10 + $0x1e4] sm:$0xff]
        %v1941 = vld [vmem:[#allocation10 + $0x1ec] sm:$0xff]
        %v1942 = vld [vmem:[#allocation10 + $0x1f4] sm:$0xff]
        %v1943 = vld [vmem:[#allocation10 + $0x1fc] sm:$0xff]
        %v1944 = vld [vmem:[#allocation10 + $0x204] sm:$0xff]
        %v1945 = vld [vmem:[#allocation10 + $0x20c] sm:$0xf]
        %v1946 = vld [vmem:[#allocation10 + $0x210] sm:$0xff]
        %v1947 = vld [vmem:[#allocation10 + $0x218] sm:$0xff]
        %v1948 = vld [vmem:[#allocation10 + $0x220] sm:$0xff]
        %v1949 = vld [vmem:[#allocation10 + $0x228] sm:$0xff]
        %v1950 = vld [vmem:[#allocation10 + $0x230] sm:$0xff]
        %v1951 = vld [vmem:[#allocation10 + $0x238] sm:$0xf]
        %v1952 = vld [vmem:[#allocation10 + $0x23c] sm:$0xff]
        %v1953 = vld [vmem:[#allocation10 + $0x244] sm:$0xff]
        %v1954 = vld [vmem:[#allocation10 + $0x24c] sm:$0xff]
        %v1955 = vld [vmem:[#allocation10 + $0x254] sm:$0xff]
        %v1956 = vld [vmem:[#allocation10 + $0x25c] sm:$0xff]
        %v1957 = vld [vmem:[#allocation10 + $0x264] sm:$0xf]
        %v1958 = vld [vmem:[#allocation10 + $0x268] sm:$0xff]
        %v1959 = vld [vmem:[#allocation10 + $0x270] sm:$0xff]
        %v1960 = vld [vmem:[#allocation10 + $0x278] sm:$0xff]
        %v1961 = vld [vmem:[#allocation10 + $0x280] sm:$0xff]
        %v1962 = vld [vmem:[#allocation10 + $0x288] sm:$0xff]
        %v1963 = vld [vmem:[#allocation10 + $0x290] sm:$0xf]
        %v1964 = vld [vmem:[#allocation10 + $0x294] sm:$0xff]
        %v1965 = vld [vmem:[#allocation10 + $0x29c] sm:$0xff]
        %v1966 = vld [vmem:[#allocation10 + $0x2a4] sm:$0xff]
        %v1967 = vld [vmem:[#allocation10 + $0x2ac] sm:$0xff]
        %v1968 = vld [vmem:[#allocation10 + $0x2b4] sm:$0xff]
        %v1969 = vld [vmem:[#allocation10 + $0x2bc] sm:$0xf]
        %v1970 = vld [vmem:[#allocation10 + $0x2c0] sm:$0xff]
        %v1971 = vld [vmem:[#allocation10 + $0x2c8] sm:$0xff]
        %v1972 = vld [vmem:[#allocation10 + $0x2d0] sm:$0xff]
        %v1973 = vld [vmem:[#allocation10 + $0x2d8] sm:$0xff]
        %v1974 = vld [vmem:[#allocation10 + $0x2e0] sm:$0xff]
        %v1975 = vld [vmem:[#allocation10 + $0x2e8] sm:$0xf]
        %v1976 = vld [vmem:[#allocation10 + $0x2ec] sm:$0xff]
        %v1977 = vld [vmem:[#allocation10 + $0x2f4] sm:$0xff]
        %v1978 = vld [vmem:[#allocation10 + $0x2fc] sm:$0xff]
        %v1979 = vld [vmem:[#allocation10 + $0x304] sm:$0xff]
        %v1980 = vld [vmem:[#allocation10 + $0x30c] sm:$0xff]
        %v1981 = vld [vmem:[#allocation10 + $0x314] sm:$0xf]
        %v1982 = vld [vmem:[#allocation10 + $0x318] sm:$0xff]
        %v1983 = vld [vmem:[#allocation10 + $0x320] sm:$0xff]
        %v1984 = vld [vmem:[#allocation10 + $0x328] sm:$0xff]
        %v1985 = vld [vmem:[#allocation10 + $0x330] sm:$0xff]
        %v1986 = vld [vmem:[#allocation10 + $0x338] sm:$0xff]
        %v1987 = vld [vmem:[#allocation10 + $0x340] sm:$0xf]
        %v1988 = vld [vmem:[#allocation10 + $0x344] sm:$0xff]
        %v1989 = vld [vmem:[#allocation10 + $0x34c] sm:$0xff]
        %v1990 = vld [vmem:[#allocation10 + $0x354] sm:$0xff]
        %v1991 = vld [vmem:[#allocation10 + $0x35c] sm:$0xff]
        %v1992 = vld [vmem:[#allocation10 + $0x364] sm:$0xff]
        %v1993 = vld [vmem:[#allocation10 + $0x36c] sm:$0xf]
        %v1994 = vld [vmem:[#allocation10 + $0x370] sm:$0xff]
        %v1995 = vld [vmem:[#allocation10 + $0x378] sm:$0xff]
        %v1996 = vld [vmem:[#allocation10 + $0x380] sm:$0xff]
        %v1997 = vld [vmem:[#allocation10 + $0x388] sm:$0xff]
        %v1998 = vld [vmem:[#allocation10 + $0x390] sm:$0xff]
        %v1999 = vld [vmem:[#allocation10 + $0x398] sm:$0xf]
        %v2000 = vld [vmem:[#allocation10 + $0x39c] sm:$0xff]
        %v2001 = vld [vmem:[#allocation10 + $0x3a4] sm:$0xff]
        %v2002 = vld [vmem:[#allocation10 + $0x3ac] sm:$0xff]
        %v2003 = vld [vmem:[#allocation10 + $0x3b4] sm:$0xff]
        %v2004 = vld [vmem:[#allocation10 + $0x3bc] sm:$0xff]
        %v2005 = vld [vmem:[#allocation10 + $0x3c4] sm:$0xf]
        %v2006 = vld [vmem:[#allocation10 + $0x3c8] sm:$0xff]
        %v2007 = vld [vmem:[#allocation10 + $0x3d0] sm:$0xff]
        %v2008 = vld [vmem:[#allocation10 + $0x3d8] sm:$0xff]
        %v2009 = vld [vmem:[#allocation10 + $0x3e0] sm:$0xff]
        %v2010 = vld [vmem:[#allocation10 + $0x3e8] sm:$0xff]
        %v2011 = vld [vmem:[#allocation10 + $0x3f0] sm:$0xf]
        %v2012 = vld [vmem:[#allocation10 + $0x3f4] sm:$0xff]
        %v2013 = vld [vmem:[#allocation10 + $0x3fc] sm:$0xff]
        %v2014 = vld [vmem:[#allocation10 + $0x404] sm:$0xff]
        %v2015 = vld [vmem:[#allocation10 + $0x40c] sm:$0xff]
        %v2016 = vld [vmem:[#allocation10 + $0x414] sm:$0xff]
        %v2017 = vld [vmem:[#allocation10 + $0x41c] sm:$0xf]
        %v2018 = vld [vmem:[#allocation10 + $0x420] sm:$0xff]
        %v2019 = vld [vmem:[#allocation10 + $0x428] sm:$0xff]
        %v2020 = vld [vmem:[#allocation10 + $0x430] sm:$0xff]
        %v2021 = vld [vmem:[#allocation10 + $0x438] sm:$0xff]
        %v2022 = vld [vmem:[#allocation10 + $0x440] sm:$0xff]
        %v2023 = vld [vmem:[#allocation10 + $0x448] sm:$0xf]
        %v2024 = vld [vmem:[#allocation10 + $0x44c] sm:$0xff]
        %v2025 = vld [vmem:[#allocation10 + $0x454] sm:$0xff]
        %v2026 = vld [vmem:[#allocation10 + $0x45c] sm:$0xff]
        %v2027 = vld [vmem:[#allocation10 + $0x464] sm:$0xff]
        %v2028 = vld [vmem:[#allocation10 + $0x46c] sm:$0xff]
        %v2029 = vld [vmem:[#allocation10 + $0x474] sm:$0xf]
        %v2030 = vld [vmem:[#allocation10 + $0x478] sm:$0xff]
        %v2031 = vld [vmem:[#allocation10 + $0x480] sm:$0xff]
        %v2032 = vld [vmem:[#allocation10 + $0x488] sm:$0xff]
        %v2033 = vld [vmem:[#allocation10 + $0x490] sm:$0xff]
        %v2034 = vld [vmem:[#allocation10 + $0x498] sm:$0xff]
        %v2035 = vld [vmem:[#allocation10 + $0x4a0] sm:$0xf]
        %v2036 = vld [vmem:[#allocation10 + $0x4a4] sm:$0xff]
        %v2037 = vld [vmem:[#allocation10 + $0x4ac] sm:$0xff]
        %v2038 = vld [vmem:[#allocation10 + $0x4b4] sm:$0xff]
        %v2039 = vld [vmem:[#allocation10 + $0x4bc] sm:$0xff]
        %v2040 = vld [vmem:[#allocation10 + $0x4c4] sm:$0xff]
        %v2041 = vld [vmem:[#allocation10 + $0x4cc] sm:$0xf]
        %v2042 = vld [vmem:[#allocation10 + $0x4d0] sm:$0xff]
        %v2043 = vld [vmem:[#allocation10 + $0x4d8] sm:$0xff]
        %v2044 = vld [vmem:[#allocation10 + $0x4e0] sm:$0xff]
        %v2045 = vld [vmem:[#allocation10 + $0x4e8] sm:$0xff]
        %v2046 = vld [vmem:[#allocation10 + $0x4f0] sm:$0xff]
        %v2047 = vld [vmem:[#allocation10 + $0x4f8] sm:$0xf]
        %v2048 = vld [vmem:[#allocation10 + $0x4fc] sm:$0xff]
        %v2049 = vld [vmem:[#allocation10 + $0x504] sm:$0xff]
        %v2050 = vld [vmem:[#allocation10 + $0x50c] sm:$0xff]
        %v2051 = vld [vmem:[#allocation10 + $0x514] sm:$0xff]
        %v2052 = vld [vmem:[#allocation10 + $0x51c] sm:$0xff]
        %v2053 = vld [vmem:[#allocation10 + $0x524] sm:$0xf]
        %v2054 = vld [vmem:[#allocation10 + $0x528] sm:$0xff]
        %v2055 = vld [vmem:[#allocation10 + $0x530] sm:$0xff]
        %v2056 = vld [vmem:[#allocation10 + $0x538] sm:$0xff]
        %v2057 = vld [vmem:[#allocation10 + $0x540] sm:$0xff]
        %v2058 = vld [vmem:[#allocation10 + $0x548] sm:$0xff]
        %v2059 = vld [vmem:[#allocation10 + $0x550] sm:$0xf]
        %v2060 = vld [vmem:[#allocation10 + $0x554] sm:$0xff]
        %v2061 = vld [vmem:[#allocation10 + $0x55c] sm:$0xff]
        %v2062 = vld [vmem:[#allocation10 + $0x564] sm:$0xff]
        %v2063 = vld [vmem:[#allocation10 + $0x56c] sm:$0xff]
        %v2064 = vld [vmem:[#allocation10 + $0x574] sm:$0xff]
        %v2065 = vld [vmem:[#allocation10 + $0x57c] sm:$0xf]
        %v2066 = vld [vmem:[#allocation11] sm:$0xff]
        %v2067 = vld [vmem:[#allocation11 + $0x8] sm:$0x7]
        %v2070 = vperm.slane %v2066, 0
        %v2071 = vperm.slane %v2066, 1
        %v2072 = vperm.slane %v2066, 2
        %v2073 = vperm.slane %v2066, 3
        %v2074 = vperm.slane %v2066, 4
        %v2075 = vperm.slane %v2066, 5
        %v2076 = vperm.slane %v2066, 6
        %v2077 = vperm.slane %v2066, 7
        %v2078 = vperm.slane %v2067, 0
        %v2079 = vperm.slane %v2067, 1
        %v2080 = vperm.slane %v2067, 2
        %v2284 = vunpack.c.l.b16 %v1874
        %v2285 = vunpack.c.h.b16 %v1874
        %v2286 = vunpack.c.l.b16 %v1875
        %v2287 = vunpack.c.h.b16 %v1875
        %v2288 = vunpack.c.l.b16 %v1876
        %v2289 = vunpack.c.h.b16 %v1876
        %v2290 = vunpack.c.l.b16 %v1877
        %v2291 = vunpack.c.h.b16 %v1877
        %v2292 = vunpack.c.l.b16 %v1878
        %v2293 = vunpack.c.h.b16 %v1878
        %v2294 = vunpack.c.l.b16 %v1879
        %v2295 = vunpack.c.l.b16 %v1880
        %v2296 = vunpack.c.h.b16 %v1880
        %v2297 = vunpack.c.l.b16 %v1881
        %v2298 = vunpack.c.h.b16 %v1881
        %v2299 = vunpack.c.l.b16 %v1882
        %v2300 = vunpack.c.h.b16 %v1882
        %v2301 = vunpack.c.l.b16 %v1883
        %v2302 = vunpack.c.h.b16 %v1883
        %v2303 = vunpack.c.l.b16 %v1884
        %v2304 = vunpack.c.h.b16 %v1884
        %v2305 = vunpack.c.l.b16 %v1885
        %v2306 = vunpack.c.l.b16 %v1886
        %v2307 = vunpack.c.h.b16 %v1886
        %v2308 = vunpack.c.l.b16 %v1887
        %v2309 = vunpack.c.h.b16 %v1887
        %v2310 = vunpack.c.l.b16 %v1888
        %v2311 = vunpack.c.h.b16 %v1888
        %v2312 = vunpack.c.l.b16 %v1889
        %v2313 = vunpack.c.h.b16 %v1889
        %v2314 = vunpack.c.l.b16 %v1890
        %v2315 = vunpack.c.h.b16 %v1890
        %v2316 = vunpack.c.l.b16 %v1891
        %v2317 = vunpack.c.l.b16 %v1892
        %v2318 = vunpack.c.h.b16 %v1892
        %v2319 = vunpack.c.l.b16 %v1893
        %v2320 = vunpack.c.h.b16 %v1893
        %v2321 = vunpack.c.l.b16 %v1894
        %v2322 = vunpack.c.h.b16 %v1894
        %v2323 = vunpack.c.l.b16 %v1895
        %v2324 = vunpack.c.h.b16 %v1895
        %v2325 = vunpack.c.l.b16 %v1896
        %v2326 = vunpack.c.h.b16 %v1896
        %v2327 = vunpack.c.l.b16 %v1897
        %v2328 = vunpack.c.l.b16 %v1898
        %v2329 = vunpack.c.h.b16 %v1898
        %v2330 = vunpack.c.l.b16 %v1899
        %v2331 = vunpack.c.h.b16 %v1899
        %v2332 = vunpack.c.l.b16 %v1900
        %v2333 = vunpack.c.h.b16 %v1900
        %v2334 = vunpack.c.l.b16 %v1901
        %v2335 = vunpack.c.h.b16 %v1901
        %v2336 = vunpack.c.l.b16 %v1902
        %v2337 = vunpack.c.h.b16 %v1902
        %v2338 = vunpack.c.l.b16 %v1903
        %v2339 = vunpack.c.l.b16 %v1904
        %v2340 = vunpack.c.h.b16 %v1904
        %v2341 = vunpack.c.l.b16 %v1905
        %v2342 = vunpack.c.h.b16 %v1905
        %v2343 = vunpack.c.l.b16 %v1906
        %v2344 = vunpack.c.h.b16 %v1906
        %v2345 = vunpack.c.l.b16 %v1907
        %v2346 = vunpack.c.h.b16 %v1907
        %v2347 = vunpack.c.l.b16 %v1908
        %v2348 = vunpack.c.h.b16 %v1908
        %v2349 = vunpack.c.l.b16 %v1909
        %v2350 = vunpack.c.l.b16 %v1910
        %v2351 = vunpack.c.h.b16 %v1910
        %v2352 = vunpack.c.l.b16 %v1911
        %v2353 = vunpack.c.h.b16 %v1911
        %v2354 = vunpack.c.l.b16 %v1912
        %v2355 = vunpack.c.h.b16 %v1912
        %v2356 = vunpack.c.l.b16 %v1913
        %v2357 = vunpack.c.h.b16 %v1913
        %v2358 = vunpack.c.l.b16 %v1914
        %v2359 = vunpack.c.h.b16 %v1914
        %v2360 = vunpack.c.l.b16 %v1915
        %v2361 = vunpack.c.l.b16 %v1916
        %v2362 = vunpack.c.h.b16 %v1916
        %v2363 = vunpack.c.l.b16 %v1917
        %v2364 = vunpack.c.h.b16 %v1917
        %v2365 = vunpack.c.l.b16 %v1918
        %v2366 = vunpack.c.h.b16 %v1918
        %v2367 = vunpack.c.l.b16 %v1919
        %v2368 = vunpack.c.h.b16 %v1919
        %v2369 = vunpack.c.l.b16 %v1920
        %v2370 = vunpack.c.h.b16 %v1920
        %v2371 = vunpack.c.l.b16 %v1921
        %v2372 = vunpack.c.l.b16 %v1922
        %v2373 = vunpack.c.h.b16 %v1922
        %v2374 = vunpack.c.l.b16 %v1923
        %v2375 = vunpack.c.h.b16 %v1923
        %v2376 = vunpack.c.l.b16 %v1924
        %v2377 = vunpack.c.h.b16 %v1924
        %v2378 = vunpack.c.l.b16 %v1925
        %v2379 = vunpack.c.h.b16 %v1925
        %v2380 = vunpack.c.l.b16 %v1926
        %v2381 = vunpack.c.h.b16 %v1926
        %v2382 = vunpack.c.l.b16 %v1927
        %v2383 = vunpack.c.l.b16 %v1928
        %v2384 = vunpack.c.h.b16 %v1928
        %v2385 = vunpack.c.l.b16 %v1929
        %v2386 = vunpack.c.h.b16 %v1929
        %v2387 = vunpack.c.l.b16 %v1930
        %v2388 = vunpack.c.h.b16 %v1930
        %v2389 = vunpack.c.l.b16 %v1931
        %v2390 = vunpack.c.h.b16 %v1931
        %v2391 = vunpack.c.l.b16 %v1932
        %v2392 = vunpack.c.h.b16 %v1932
        %v2393 = vunpack.c.l.b16 %v1933
        %v2394 = vunpack.c.l.b16 %v1934
        %v2395 = vunpack.c.h.b16 %v1934
        %v2396 = vunpack.c.l.b16 %v1935
        %v2397 = vunpack.c.h.b16 %v1935
        %v2398 = vunpack.c.l.b16 %v1936
        %v2399 = vunpack.c.h.b16 %v1936
        %v2400 = vunpack.c.l.b16 %v1937
        %v2401 = vunpack.c.h.b16 %v1937
        %v2402 = vunpack.c.l.b16 %v1938
        %v2403 = vunpack.c.h.b16 %v1938
        %v2404 = vunpack.c.l.b16 %v1939
        %v2405 = vunpack.c.l.b16 %v1940
        %v2406 = vunpack.c.h.b16 %v1940
        %v2407 = vunpack.c.l.b16 %v1941
        %v2408 = vunpack.c.h.b16 %v1941
        %v2409 = vunpack.c.l.b16 %v1942
        %v2410 = vunpack.c.h.b16 %v1942
        %v2411 = vunpack.c.l.b16 %v1943
        %v2412 = vunpack.c.h.b16 %v1943
        %v2413 = vunpack.c.l.b16 %v1944
        %v2414 = vunpack.c.h.b16 %v1944
        %v2415 = vunpack.c.l.b16 %v1945
        %v2416 = vunpack.c.l.b16 %v1946
        %v2417 = vunpack.c.h.b16 %v1946
        %v2418 = vunpack.c.l.b16 %v1947
        %v2419 = vunpack.c.h.b16 %v1947
        %v2420 = vunpack.c.l.b16 %v1948
        %v2421 = vunpack.c.h.b16 %v1948
        %v2422 = vunpack.c.l.b16 %v1949
        %v2423 = vunpack.c.h.b16 %v1949
        %v2424 = vunpack.c.l.b16 %v1950
        %v2425 = vunpack.c.h.b16 %v1950
        %v2426 = vunpack.c.l.b16 %v1951
        %v2427 = vunpack.c.l.b16 %v1952
        %v2428 = vunpack.c.h.b16 %v1952
        %v2429 = vunpack.c.l.b16 %v1953
        %v2430 = vunpack.c.h.b16 %v1953
        %v2431 = vunpack.c.l.b16 %v1954
        %v2432 = vunpack.c.h.b16 %v1954
        %v2433 = vunpack.c.l.b16 %v1955
        %v2434 = vunpack.c.h.b16 %v1955
        %v2435 = vunpack.c.l.b16 %v1956
        %v2436 = vunpack.c.h.b16 %v1956
        %v2437 = vunpack.c.l.b16 %v1957
        %v2438 = vunpack.c.l.b16 %v1958
        %v2439 = vunpack.c.h.b16 %v1958
        %v2440 = vunpack.c.l.b16 %v1959
        %v2441 = vunpack.c.h.b16 %v1959
        %v2442 = vunpack.c.l.b16 %v1960
        %v2443 = vunpack.c.h.b16 %v1960
        %v2444 = vunpack.c.l.b16 %v1961
        %v2445 = vunpack.c.h.b16 %v1961
        %v2446 = vunpack.c.l.b16 %v1962
        %v2447 = vunpack.c.h.b16 %v1962
        %v2448 = vunpack.c.l.b16 %v1963
        %v2449 = vunpack.c.l.b16 %v1964
        %v2450 = vunpack.c.h.b16 %v1964
        %v2451 = vunpack.c.l.b16 %v1965
        %v2452 = vunpack.c.h.b16 %v1965
        %v2453 = vunpack.c.l.b16 %v1966
        %v2454 = vunpack.c.h.b16 %v1966
        %v2455 = vunpack.c.l.b16 %v1967
        %v2456 = vunpack.c.h.b16 %v1967
        %v2457 = vunpack.c.l.b16 %v1968
        %v2458 = vunpack.c.h.b16 %v1968
        %v2459 = vunpack.c.l.b16 %v1969
        %v2460 = vunpack.c.l.b16 %v1970
        %v2461 = vunpack.c.h.b16 %v1970
        %v2462 = vunpack.c.l.b16 %v1971
        %v2463 = vunpack.c.h.b16 %v1971
        %v2464 = vunpack.c.l.b16 %v1972
        %v2465 = vunpack.c.h.b16 %v1972
        %v2466 = vunpack.c.l.b16 %v1973
        %v2467 = vunpack.c.h.b16 %v1973
        %v2468 = vunpack.c.l.b16 %v1974
        %v2469 = vunpack.c.h.b16 %v1974
        %v2470 = vunpack.c.l.b16 %v1975
        %v2471 = vunpack.c.l.b16 %v1976
        %v2472 = vunpack.c.h.b16 %v1976
        %v2473 = vunpack.c.l.b16 %v1977
        %v2474 = vunpack.c.h.b16 %v1977
        %v2475 = vunpack.c.l.b16 %v1978
        %v2476 = vunpack.c.h.b16 %v1978
        %v2477 = vunpack.c.l.b16 %v1979
        %v2478 = vunpack.c.h.b16 %v1979
        %v2479 = vunpack.c.l.b16 %v1980
        %v2480 = vunpack.c.h.b16 %v1980
        %v2481 = vunpack.c.l.b16 %v1981
        %v2482 = vunpack.c.l.b16 %v1982
        %v2483 = vunpack.c.h.b16 %v1982
        %v2484 = vunpack.c.l.b16 %v1983
        %v2485 = vunpack.c.h.b16 %v1983
        %v2486 = vunpack.c.l.b16 %v1984
        %v2487 = vunpack.c.h.b16 %v1984
        %v2488 = vunpack.c.l.b16 %v1985
        %v2489 = vunpack.c.h.b16 %v1985
        %v2490 = vunpack.c.l.b16 %v1986
        %v2491 = vunpack.c.h.b16 %v1986
        %v2492 = vunpack.c.l.b16 %v1987
        %v2493 = vunpack.c.l.b16 %v1988
        %v2494 = vunpack.c.h.b16 %v1988
        %v2495 = vunpack.c.l.b16 %v1989
        %v2496 = vunpack.c.h.b16 %v1989
        %v2497 = vunpack.c.l.b16 %v1990
        %v2498 = vunpack.c.h.b16 %v1990
        %v2499 = vunpack.c.l.b16 %v1991
        %v2500 = vunpack.c.h.b16 %v1991
        %v2501 = vunpack.c.l.b16 %v1992
        %v2502 = vunpack.c.h.b16 %v1992
        %v2503 = vunpack.c.l.b16 %v1993
        %v2504 = vunpack.c.l.b16 %v1994
        %v2505 = vunpack.c.h.b16 %v1994
        %v2506 = vunpack.c.l.b16 %v1995
        %v2507 = vunpack.c.h.b16 %v1995
        %v2508 = vunpack.c.l.b16 %v1996
        %v2509 = vunpack.c.h.b16 %v1996
        %v2510 = vunpack.c.l.b16 %v1997
        %v2511 = vunpack.c.h.b16 %v1997
        %v2512 = vunpack.c.l.b16 %v1998
        %v2513 = vunpack.c.h.b16 %v1998
        %v2514 = vunpack.c.l.b16 %v1999
        %v2515 = vunpack.c.l.b16 %v2000
        %v2516 = vunpack.c.h.b16 %v2000
        %v2517 = vunpack.c.l.b16 %v2001
        %v2518 = vunpack.c.h.b16 %v2001
        %v2519 = vunpack.c.l.b16 %v2002
        %v2520 = vunpack.c.h.b16 %v2002
        %v2521 = vunpack.c.l.b16 %v2003
        %v2522 = vunpack.c.h.b16 %v2003
        %v2523 = vunpack.c.l.b16 %v2004
        %v2524 = vunpack.c.h.b16 %v2004
        %v2525 = vunpack.c.l.b16 %v2005
        %v2526 = vunpack.c.l.b16 %v2006
        %v2527 = vunpack.c.h.b16 %v2006
        %v2528 = vunpack.c.l.b16 %v2007
        %v2529 = vunpack.c.h.b16 %v2007
        %v2530 = vunpack.c.l.b16 %v2008
        %v2531 = vunpack.c.h.b16 %v2008
        %v2532 = vunpack.c.l.b16 %v2009
        %v2533 = vunpack.c.h.b16 %v2009
        %v2534 = vunpack.c.l.b16 %v2010
        %v2535 = vunpack.c.h.b16 %v2010
        %v2536 = vunpack.c.l.b16 %v2011
        %v2537 = vunpack.c.l.b16 %v2012
        %v2538 = vunpack.c.h.b16 %v2012
        %v2539 = vunpack.c.l.b16 %v2013
        %v2540 = vunpack.c.h.b16 %v2013
        %v2541 = vunpack.c.l.b16 %v2014
        %v2542 = vunpack.c.h.b16 %v2014
        %v2543 = vunpack.c.l.b16 %v2015
        %v2544 = vunpack.c.h.b16 %v2015
        %v2545 = vunpack.c.l.b16 %v2016
        %v2546 = vunpack.c.h.b16 %v2016
        %v2547 = vunpack.c.l.b16 %v2017
        %v2548 = vunpack.c.l.b16 %v2018
        %v2549 = vunpack.c.h.b16 %v2018
        %v2550 = vunpack.c.l.b16 %v2019
        %v2551 = vunpack.c.h.b16 %v2019
        %v2552 = vunpack.c.l.b16 %v2020
        %v2553 = vunpack.c.h.b16 %v2020
        %v2554 = vunpack.c.l.b16 %v2021
        %v2555 = vunpack.c.h.b16 %v2021
        %v2556 = vunpack.c.l.b16 %v2022
        %v2557 = vunpack.c.h.b16 %v2022
        %v2558 = vunpack.c.l.b16 %v2023
        %v2559 = vunpack.c.l.b16 %v2024
        %v2560 = vunpack.c.h.b16 %v2024
        %v2561 = vunpack.c.l.b16 %v2025
        %v2562 = vunpack.c.h.b16 %v2025
        %v2563 = vunpack.c.l.b16 %v2026
        %v2564 = vunpack.c.h.b16 %v2026
        %v2565 = vunpack.c.l.b16 %v2027
        %v2566 = vunpack.c.h.b16 %v2027
        %v2567 = vunpack.c.l.b16 %v2028
        %v2568 = vunpack.c.h.b16 %v2028
        %v2569 = vunpack.c.l.b16 %v2029
        %v2570 = vunpack.c.l.b16 %v2030
        %v2571 = vunpack.c.h.b16 %v2030
        %v2572 = vunpack.c.l.b16 %v2031
        %v2573 = vunpack.c.h.b16 %v2031
        %v2574 = vunpack.c.l.b16 %v2032
        %v2575 = vunpack.c.h.b16 %v2032
        %v2576 = vunpack.c.l.b16 %v2033
        %v2577 = vunpack.c.h.b16 %v2033
        %v2578 = vunpack.c.l.b16 %v2034
        %v2579 = vunpack.c.h.b16 %v2034
        %v2580 = vunpack.c.l.b16 %v2035
        %v2581 = vunpack.c.l.b16 %v2036
        %v2582 = vunpack.c.h.b16 %v2036
        %v2583 = vunpack.c.l.b16 %v2037
        %v2584 = vunpack.c.h.b16 %v2037
        %v2585 = vunpack.c.l.b16 %v2038
        %v2586 = vunpack.c.h.b16 %v2038
        %v2587 = vunpack.c.l.b16 %v2039
        %v2588 = vunpack.c.h.b16 %v2039
        %v2589 = vunpack.c.l.b16 %v2040
        %v2590 = vunpack.c.h.b16 %v2040
        %v2591 = vunpack.c.l.b16 %v2041
        %v2592 = vunpack.c.l.b16 %v2042
        %v2593 = vunpack.c.h.b16 %v2042
        %v2594 = vunpack.c.l.b16 %v2043
        %v2595 = vunpack.c.h.b16 %v2043
        %v2596 = vunpack.c.l.b16 %v2044
        %v2597 = vunpack.c.h.b16 %v2044
        %v2598 = vunpack.c.l.b16 %v2045
        %v2599 = vunpack.c.h.b16 %v2045
        %v2600 = vunpack.c.l.b16 %v2046
        %v2601 = vunpack.c.h.b16 %v2046
        %v2602 = vunpack.c.l.b16 %v2047
        %v2603 = vunpack.c.l.b16 %v2048
        %v2604 = vunpack.c.h.b16 %v2048
        %v2605 = vunpack.c.l.b16 %v2049
        %v2606 = vunpack.c.h.b16 %v2049
        %v2607 = vunpack.c.l.b16 %v2050
        %v2608 = vunpack.c.h.b16 %v2050
        %v2609 = vunpack.c.l.b16 %v2051
        %v2610 = vunpack.c.h.b16 %v2051
        %v2611 = vunpack.c.l.b16 %v2052
        %v2612 = vunpack.c.h.b16 %v2052
        %v2613 = vunpack.c.l.b16 %v2053
        %v2614 = vunpack.c.l.b16 %v2054
        %v2615 = vunpack.c.h.b16 %v2054
        %v2616 = vunpack.c.l.b16 %v2055
        %v2617 = vunpack.c.h.b16 %v2055
        %v2618 = vunpack.c.l.b16 %v2056
        %v2619 = vunpack.c.h.b16 %v2056
        %v2620 = vunpack.c.l.b16 %v2057
        %v2621 = vunpack.c.h.b16 %v2057
        %v2622 = vunpack.c.l.b16 %v2058
        %v2623 = vunpack.c.h.b16 %v2058
        %v2624 = vunpack.c.l.b16 %v2059
        %v2625 = vunpack.c.l.b16 %v2060
        %v2626 = vunpack.c.h.b16 %v2060
        %v2627 = vunpack.c.l.b16 %v2061
        %v2628 = vunpack.c.h.b16 %v2061
        %v2629 = vunpack.c.l.b16 %v2062
        %v2630 = vunpack.c.h.b16 %v2062
        %v2631 = vunpack.c.l.b16 %v2063
        %v2632 = vunpack.c.h.b16 %v2063
        %v2633 = vunpack.c.l.b16 %v2064
        %v2634 = vunpack.c.h.b16 %v2064
        %v2635 = vunpack.c.l.b16 %v2065
        %v2636 = vpack.c.b16 %v2295, %v2284
        %v2637 = vpack.c.b16 %v2296, %v2285
        %v2638 = vpack.c.b16 %v2297, %v2286
        %v2639 = vpack.c.b16 %v2298, %v2287
        %v2640 = vpack.c.b16 %v2299, %v2288
        %v2641 = vpack.c.b16 %v2300, %v2289
        %v2642 = vpack.c.b16 %v2301, %v2290
        %v2643 = vpack.c.b16 %v2302, %v2291
        %v2644 = vpack.c.b16 %v2303, %v2292
        %v2645 = vpack.c.b16 %v2304, %v2293
        %v2646 = vpack.c.b16 %v2305, %v2294
        %v2647 = vpack.c.b16 %v2317, %v2306
        %v2648 = vpack.c.b16 %v2318, %v2307
        %v2649 = vpack.c.b16 %v2319, %v2308
        %v2650 = vpack.c.b16 %v2320, %v2309
        %v2651 = vpack.c.b16 %v2321, %v2310
        %v2652 = vpack.c.b16 %v2322, %v2311
        %v2653 = vpack.c.b16 %v2323, %v2312
        %v2654 = vpack.c.b16 %v2324, %v2313
        %v2655 = vpack.c.b16 %v2325, %v2314
        %v2656 = vpack.c.b16 %v2326, %v2315
        %v2657 = vpack.c.b16 %v2327, %v2316
        %v2658 = vpack.c.b16 %v2339, %v2328
        %v2659 = vpack.c.b16 %v2340, %v2329
        %v2660 = vpack.c.b16 %v2341, %v2330
        %v2661 = vpack.c.b16 %v2342, %v2331
        %v2662 = vpack.c.b16 %v2343, %v2332
        %v2663 = vpack.c.b16 %v2344, %v2333
        %v2664 = vpack.c.b16 %v2345, %v2334
        %v2665 = vpack.c.b16 %v2346, %v2335
        %v2666 = vpack.c.b16 %v2347, %v2336
        %v2667 = vpack.c.b16 %v2348, %v2337
        %v2668 = vpack.c.b16 %v2349, %v2338
        %v2669 = vpack.c.b16 %v2361, %v2350
        %v2670 = vpack.c.b16 %v2362, %v2351
        %v2671 = vpack.c.b16 %v2363, %v2352
        %v2672 = vpack.c.b16 %v2364, %v2353
        %v2673 = vpack.c.b16 %v2365, %v2354
        %v2674 = vpack.c.b16 %v2366, %v2355
        %v2675 = vpack.c.b16 %v2367, %v2356
        %v2676 = vpack.c.b16 %v2368, %v2357
        %v2677 = vpack.c.b16 %v2369, %v2358
        %v2678 = vpack.c.b16 %v2370, %v2359
        %v2679 = vpack.c.b16 %v2371, %v2360
        %v2680 = vpack.c.b16 %v2383, %v2372
        %v2681 = vpack.c.b16 %v2384, %v2373
        %v2682 = vpack.c.b16 %v2385, %v2374
        %v2683 = vpack.c.b16 %v2386, %v2375
        %v2684 = vpack.c.b16 %v2387, %v2376
        %v2685 = vpack.c.b16 %v2388, %v2377
        %v2686 = vpack.c.b16 %v2389, %v2378
        %v2687 = vpack.c.b16 %v2390, %v2379
        %v2688 = vpack.c.b16 %v2391, %v2380
        %v2689 = vpack.c.b16 %v2392, %v2381
        %v2690 = vpack.c.b16 %v2393, %v2382
        %v2691 = vpack.c.b16 %v2405, %v2394
        %v2692 = vpack.c.b16 %v2406, %v2395
        %v2693 = vpack.c.b16 %v2407, %v2396
        %v2694 = vpack.c.b16 %v2408, %v2397
        %v2695 = vpack.c.b16 %v2409, %v2398
        %v2696 = vpack.c.b16 %v2410, %v2399
        %v2697 = vpack.c.b16 %v2411, %v2400
        %v2698 = vpack.c.b16 %v2412, %v2401
        %v2699 = vpack.c.b16 %v2413, %v2402
        %v2700 = vpack.c.b16 %v2414, %v2403
        %v2701 = vpack.c.b16 %v2415, %v2404
        %v2702 = vpack.c.b16 %v2427, %v2416
        %v2703 = vpack.c.b16 %v2428, %v2417
        %v2704 = vpack.c.b16 %v2429, %v2418
        %v2705 = vpack.c.b16 %v2430, %v2419
        %v2706 = vpack.c.b16 %v2431, %v2420
        %v2707 = vpack.c.b16 %v2432, %v2421
        %v2708 = vpack.c.b16 %v2433, %v2422
        %v2709 = vpack.c.b16 %v2434, %v2423
        %v2710 = vpack.c.b16 %v2435, %v2424
        %v2711 = vpack.c.b16 %v2436, %v2425
        %v2712 = vpack.c.b16 %v2437, %v2426
        %v2713 = vpack.c.b16 %v2449, %v2438
        %v2714 = vpack.c.b16 %v2450, %v2439
        %v2715 = vpack.c.b16 %v2451, %v2440
        %v2716 = vpack.c.b16 %v2452, %v2441
        %v2717 = vpack.c.b16 %v2453, %v2442
        %v2718 = vpack.c.b16 %v2454, %v2443
        %v2719 = vpack.c.b16 %v2455, %v2444
        %v2720 = vpack.c.b16 %v2456, %v2445
        %v2721 = vpack.c.b16 %v2457, %v2446
        %v2722 = vpack.c.b16 %v2458, %v2447
        %v2723 = vpack.c.b16 %v2459, %v2448
        %v2724 = vpack.c.b16 %v2471, %v2460
        %v2725 = vpack.c.b16 %v2472, %v2461
        %v2726 = vpack.c.b16 %v2473, %v2462
        %v2727 = vpack.c.b16 %v2474, %v2463
        %v2728 = vpack.c.b16 %v2475, %v2464
        %v2729 = vpack.c.b16 %v2476, %v2465
        %v2730 = vpack.c.b16 %v2477, %v2466
        %v2731 = vpack.c.b16 %v2478, %v2467
        %v2732 = vpack.c.b16 %v2479, %v2468
        %v2733 = vpack.c.b16 %v2480, %v2469
        %v2734 = vpack.c.b16 %v2481, %v2470
        %v2735 = vpack.c.b16 %v2493, %v2482
        %v2736 = vpack.c.b16 %v2494, %v2483
        %v2737 = vpack.c.b16 %v2495, %v2484
        %v2738 = vpack.c.b16 %v2496, %v2485
        %v2739 = vpack.c.b16 %v2497, %v2486
        %v2740 = vpack.c.b16 %v2498, %v2487
        %v2741 = vpack.c.b16 %v2499, %v2488
        %v2742 = vpack.c.b16 %v2500, %v2489
        %v2743 = vpack.c.b16 %v2501, %v2490
        %v2744 = vpack.c.b16 %v2502, %v2491
        %v2745 = vpack.c.b16 %v2503, %v2492
        %v2746 = vpack.c.b16 %v2515, %v2504
        %v2747 = vpack.c.b16 %v2516, %v2505
        %v2748 = vpack.c.b16 %v2517, %v2506
        %v2749 = vpack.c.b16 %v2518, %v2507
        %v2750 = vpack.c.b16 %v2519, %v2508
        %v2751 = vpack.c.b16 %v2520, %v2509
        %v2752 = vpack.c.b16 %v2521, %v2510
        %v2753 = vpack.c.b16 %v2522, %v2511
        %v2754 = vpack.c.b16 %v2523, %v2512
        %v2755 = vpack.c.b16 %v2524, %v2513
        %v2756 = vpack.c.b16 %v2525, %v2514
        %v2757 = vpack.c.b16 %v2537, %v2526
        %v2758 = vpack.c.b16 %v2538, %v2527
        %v2759 = vpack.c.b16 %v2539, %v2528
        %v2760 = vpack.c.b16 %v2540, %v2529
        %v2761 = vpack.c.b16 %v2541, %v2530
        %v2762 = vpack.c.b16 %v2542, %v2531
        %v2763 = vpack.c.b16 %v2543, %v2532
        %v2764 = vpack.c.b16 %v2544, %v2533
        %v2765 = vpack.c.b16 %v2545, %v2534
        %v2766 = vpack.c.b16 %v2546, %v2535
        %v2767 = vpack.c.b16 %v2547, %v2536
        %v2768 = vpack.c.b16 %v2559, %v2548
        %v2769 = vpack.c.b16 %v2560, %v2549
        %v2770 = vpack.c.b16 %v2561, %v2550
        %v2771 = vpack.c.b16 %v2562, %v2551
        %v2772 = vpack.c.b16 %v2563, %v2552
        %v2773 = vpack.c.b16 %v2564, %v2553
        %v2774 = vpack.c.b16 %v2565, %v2554
        %v2775 = vpack.c.b16 %v2566, %v2555
        %v2776 = vpack.c.b16 %v2567, %v2556
        %v2777 = vpack.c.b16 %v2568, %v2557
        %v2778 = vpack.c.b16 %v2569, %v2558
        %v2779 = vpack.c.b16 %v2581, %v2570
        %v2780 = vpack.c.b16 %v2582, %v2571
        %v2781 = vpack.c.b16 %v2583, %v2572
        %v2782 = vpack.c.b16 %v2584, %v2573
        %v2783 = vpack.c.b16 %v2585, %v2574
        %v2784 = vpack.c.b16 %v2586, %v2575
        %v2785 = vpack.c.b16 %v2587, %v2576
        %v2786 = vpack.c.b16 %v2588, %v2577
        %v2787 = vpack.c.b16 %v2589, %v2578
        %v2788 = vpack.c.b16 %v2590, %v2579
        %v2789 = vpack.c.b16 %v2591, %v2580
        %v2790 = vpack.c.b16 %v2603, %v2592
        %v2791 = vpack.c.b16 %v2604, %v2593
        %v2792 = vpack.c.b16 %v2605, %v2594
        %v2793 = vpack.c.b16 %v2606, %v2595
        %v2794 = vpack.c.b16 %v2607, %v2596
        %v2795 = vpack.c.b16 %v2608, %v2597
        %v2796 = vpack.c.b16 %v2609, %v2598
        %v2797 = vpack.c.b16 %v2610, %v2599
        %v2798 = vpack.c.b16 %v2611, %v2600
        %v2799 = vpack.c.b16 %v2612, %v2601
        %v2800 = vpack.c.b16 %v2613, %v2602
        %v2801 = vpack.c.b16 %v2625, %v2614
        %v2802 = vpack.c.b16 %v2626, %v2615
        %v2803 = vpack.c.b16 %v2627, %v2616
        %v2804 = vpack.c.b16 %v2628, %v2617
        %v2805 = vpack.c.b16 %v2629, %v2618
        %v2806 = vpack.c.b16 %v2630, %v2619
        %v2807 = vpack.c.b16 %v2631, %v2620
        %v2808 = vpack.c.b16 %v2632, %v2621
        %v2809 = vpack.c.b16 %v2633, %v2622
        %v2810 = vpack.c.b16 %v2634, %v2623
        %v2811 = vpack.c.b16 %v2635, %v2624
        %2988 = vmatpush.bf16.msra.mxu0 %v2713
        %2989 = vmatpush.bf16.msra.mxu0 %v2702
        %2990 = vmatpush.bf16.msra.mxu0 %v2691
        %2991 = vmatpush.bf16.msra.mxu0 %v2680
        %2992 = vmatpush.bf16.msra.mxu0 %v2669
        %2993 = vmatpush.bf16.msra.mxu0 %v2658
        %2994 = vmatpush.bf16.msra.mxu0 %v2647
        %2995 = vmatpush.bf16.msra.mxu0 %v2636
        %2996 = vmatmul.bf16.gmra.mxu0 %v1872
        %v2997 = vpop.f32.mrf.mxu0
        %v2998 = vadd.f32 %v2070, %v2997
        %v2999 = vpop.f32.mrf.mxu0
        %3000 = vdwg.mxu0
        %3001 = vmatpush.bf16.msra.mxu0 %v2801
        %3002 = vmatpush.bf16.msra.mxu0 %v2790
        %3003 = vmatpush.bf16.msra.mxu0 %v2779
        %3004 = vmatpush.bf16.msra.mxu0 %v2768
        %3005 = vmatpush.bf16.msra.mxu0 %v2757
        %3006 = vmatpush.bf16.msra.mxu0 %v2746
        %3007 = vmatpush.bf16.msra.mxu0 %v2735
        %3008 = vmatpush.bf16.msra.mxu0 %v2724
        %3009 = vmatmul.bf16.gmra.mxu0 %v1873
        %v3010 = vpop.f32.mrf.mxu0
        %v3011 = vadd.f32 %v2998, %v3010
        %v3012 = vpop.f32.mrf.mxu0
        %3013 = vdwg.mxu0
        %3014 = vmatpush.bf16.msra.mxu0 %v2714
        %3015 = vmatpush.bf16.msra.mxu0 %v2703
        %3016 = vmatpush.bf16.msra.mxu0 %v2692
        %3017 = vmatpush.bf16.msra.mxu0 %v2681
        %3018 = vmatpush.bf16.msra.mxu0 %v2670
        %3019 = vmatpush.bf16.msra.mxu0 %v2659
        %3020 = vmatpush.bf16.msra.mxu0 %v2648
        %3021 = vmatpush.bf16.msra.mxu0 %v2637
        %3022 = vmatmul.bf16.gmra.mxu0 %v1872
        %v3023 = vpop.f32.mrf.mxu0
        %v3024 = vadd.f32 %v2071, %v3023
        %v3025 = vpop.f32.mrf.mxu0
        %3026 = vdwg.mxu0
        %3027 = vmatpush.bf16.msra.mxu0 %v2802
        %3028 = vmatpush.bf16.msra.mxu0 %v2791
        %3029 = vmatpush.bf16.msra.mxu0 %v2780
        %3030 = vmatpush.bf16.msra.mxu0 %v2769
        %3031 = vmatpush.bf16.msra.mxu0 %v2758
        %3032 = vmatpush.bf16.msra.mxu0 %v2747
        %3033 = vmatpush.bf16.msra.mxu0 %v2736
        %3034 = vmatpush.bf16.msra.mxu0 %v2725
        %3035 = vmatmul.bf16.gmra.mxu0 %v1873
        %v3036 = vpop.f32.mrf.mxu0
        %v3037 = vadd.f32 %v3024, %v3036
        %v3038 = vpop.f32.mrf.mxu0
        %3039 = vdwg.mxu0
        %3040 = vmatpush.bf16.msra.mxu0 %v2715
        %3041 = vmatpush.bf16.msra.mxu0 %v2704
        %3042 = vmatpush.bf16.msra.mxu0 %v2693
        %3043 = vmatpush.bf16.msra.mxu0 %v2682
        %3044 = vmatpush.bf16.msra.mxu0 %v2671
        %3045 = vmatpush.bf16.msra.mxu0 %v2660
        %3046 = vmatpush.bf16.msra.mxu0 %v2649
        %3047 = vmatpush.bf16.msra.mxu0 %v2638
        %3048 = vmatmul.bf16.gmra.mxu0 %v1872
        %v3049 = vpop.f32.mrf.mxu0
        %v3050 = vadd.f32 %v2072, %v3049
        %v3051 = vpop.f32.mrf.mxu0
        %3052 = vdwg.mxu0
        %3053 = vmatpush.bf16.msra.mxu0 %v2803
        %3054 = vmatpush.bf16.msra.mxu0 %v2792
        %3055 = vmatpush.bf16.msra.mxu0 %v2781
        %3056 = vmatpush.bf16.msra.mxu0 %v2770
        %3057 = vmatpush.bf16.msra.mxu0 %v2759
        %3058 = vmatpush.bf16.msra.mxu0 %v2748
        %3059 = vmatpush.bf16.msra.mxu0 %v2737
        %3060 = vmatpush.bf16.msra.mxu0 %v2726
        %3061 = vmatmul.bf16.gmra.mxu0 %v1873
        %v3062 = vpop.f32.mrf.mxu0
        %v3063 = vadd.f32 %v3050, %v3062
        %v3064 = vpop.f32.mrf.mxu0
        %3065 = vdwg.mxu0
        %3066 = vmatpush.bf16.msra.mxu0 %v2716
        %3067 = vmatpush.bf16.msra.mxu0 %v2705
        %3068 = vmatpush.bf16.msra.mxu0 %v2694
        %3069 = vmatpush.bf16.msra.mxu0 %v2683
        %3070 = vmatpush.bf16.msra.mxu0 %v2672
        %3071 = vmatpush.bf16.msra.mxu0 %v2661
        %3072 = vmatpush.bf16.msra.mxu0 %v2650
        %3073 = vmatpush.bf16.msra.mxu0 %v2639
        %3074 = vmatmul.bf16.gmra.mxu0 %v1872
        %v3075 = vpop.f32.mrf.mxu0
        %v3076 = vadd.f32 %v2073, %v3075
        %v3077 = vpop.f32.mrf.mxu0
        %3078 = vdwg.mxu0
        %3079 = vmatpush.bf16.msra.mxu0 %v2804
        %3080 = vmatpush.bf16.msra.mxu0 %v2793
        %3081 = vmatpush.bf16.msra.mxu0 %v2782
        %3082 = vmatpush.bf16.msra.mxu0 %v2771
        %3083 = vmatpush.bf16.msra.mxu0 %v2760
        %3084 = vmatpush.bf16.msra.mxu0 %v2749
        %3085 = vmatpush.bf16.msra.mxu0 %v2738
        %3086 = vmatpush.bf16.msra.mxu0 %v2727
        %3087 = vmatmul.bf16.gmra.mxu0 %v1873
        %v3088 = vpop.f32.mrf.mxu0
        %v3089 = vadd.f32 %v3076, %v3088
        %v3090 = vpop.f32.mrf.mxu0
        %3091 = vdwg.mxu0
        %3092 = vmatpush.bf16.msra.mxu0 %v2717
        %3093 = vmatpush.bf16.msra.mxu0 %v2706
        %3094 = vmatpush.bf16.msra.mxu0 %v2695
        %3095 = vmatpush.bf16.msra.mxu0 %v2684
        %3096 = vmatpush.bf16.msra.mxu0 %v2673
        %3097 = vmatpush.bf16.msra.mxu0 %v2662
        %3098 = vmatpush.bf16.msra.mxu0 %v2651
        %3099 = vmatpush.bf16.msra.mxu0 %v2640
        %3100 = vmatmul.bf16.gmra.mxu0 %v1872
        %v3101 = vpop.f32.mrf.mxu0
        %v3102 = vadd.f32 %v2074, %v3101
        %v3103 = vpop.f32.mrf.mxu0
        %3104 = vdwg.mxu0
        %3105 = vmatpush.bf16.msra.mxu0 %v2805
        %3106 = vmatpush.bf16.msra.mxu0 %v2794
        %3107 = vmatpush.bf16.msra.mxu0 %v2783
        %3108 = vmatpush.bf16.msra.mxu0 %v2772
        %3109 = vmatpush.bf16.msra.mxu0 %v2761
        %3110 = vmatpush.bf16.msra.mxu0 %v2750
        %3111 = vmatpush.bf16.msra.mxu0 %v2739
        %3112 = vmatpush.bf16.msra.mxu0 %v2728
        %3113 = vmatmul.bf16.gmra.mxu0 %v1873
        %v3114 = vpop.f32.mrf.mxu0
        %v3115 = vadd.f32 %v3102, %v3114
        %v3116 = vpop.f32.mrf.mxu0
        %3117 = vdwg.mxu0
        %3118 = vmatpush.bf16.msra.mxu0 %v2718
        %3119 = vmatpush.bf16.msra.mxu0 %v2707
        %3120 = vmatpush.bf16.msra.mxu0 %v2696
        %3121 = vmatpush.bf16.msra.mxu0 %v2685
        %3122 = vmatpush.bf16.msra.mxu0 %v2674
        %3123 = vmatpush.bf16.msra.mxu0 %v2663
        %3124 = vmatpush.bf16.msra.mxu0 %v2652
        %3125 = vmatpush.bf16.msra.mxu0 %v2641
        %3126 = vmatmul.bf16.gmra.mxu0 %v1872
        %v3127 = vpop.f32.mrf.mxu0
        %v3128 = vadd.f32 %v2075, %v3127
        %v3129 = vpop.f32.mrf.mxu0
        %3130 = vdwg.mxu0
        %3131 = vmatpush.bf16.msra.mxu0 %v2806
        %3132 = vmatpush.bf16.msra.mxu0 %v2795
        %3133 = vmatpush.bf16.msra.mxu0 %v2784
        %3134 = vmatpush.bf16.msra.mxu0 %v2773
        %3135 = vmatpush.bf16.msra.mxu0 %v2762
        %3136 = vmatpush.bf16.msra.mxu0 %v2751
        %3137 = vmatpush.bf16.msra.mxu0 %v2740
        %3138 = vmatpush.bf16.msra.mxu0 %v2729
        %3139 = vmatmul.bf16.gmra.mxu0 %v1873
        %v3140 = vpop.f32.mrf.mxu0
        %v3141 = vadd.f32 %v3128, %v3140
        %v3142 = vpop.f32.mrf.mxu0
        %3143 = vdwg.mxu0
        %3144 = vmatpush.bf16.msra.mxu0 %v2719
        %3145 = vmatpush.bf16.msra.mxu0 %v2708
        %3146 = vmatpush.bf16.msra.mxu0 %v2697
        %3147 = vmatpush.bf16.msra.mxu0 %v2686
        %3148 = vmatpush.bf16.msra.mxu0 %v2675
        %3149 = vmatpush.bf16.msra.mxu0 %v2664
        %3150 = vmatpush.bf16.msra.mxu0 %v2653
        %3151 = vmatpush.bf16.msra.mxu0 %v2642
        %3152 = vmatmul.bf16.gmra.mxu0 %v1872
        %v3153 = vpop.f32.mrf.mxu0
        %v3154 = vadd.f32 %v2076, %v3153
        %v3155 = vpop.f32.mrf.mxu0
        %3156 = vdwg.mxu0
        %3157 = vmatpush.bf16.msra.mxu0 %v2807
        %3158 = vmatpush.bf16.msra.mxu0 %v2796
        %3159 = vmatpush.bf16.msra.mxu0 %v2785
        %3160 = vmatpush.bf16.msra.mxu0 %v2774
        %3161 = vmatpush.bf16.msra.mxu0 %v2763
        %3162 = vmatpush.bf16.msra.mxu0 %v2752
        %3163 = vmatpush.bf16.msra.mxu0 %v2741
        %3164 = vmatpush.bf16.msra.mxu0 %v2730
        %3165 = vmatmul.bf16.gmra.mxu0 %v1873
        %v3166 = vpop.f32.mrf.mxu0
        %v3167 = vadd.f32 %v3154, %v3166
        %v3168 = vpop.f32.mrf.mxu0
        %3169 = vdwg.mxu0
        %3170 = vmatpush.bf16.msra.mxu0 %v2720
        %3171 = vmatpush.bf16.msra.mxu0 %v2709
        %3172 = vmatpush.bf16.msra.mxu0 %v2698
        %3173 = vmatpush.bf16.msra.mxu0 %v2687
        %3174 = vmatpush.bf16.msra.mxu0 %v2676
        %3175 = vmatpush.bf16.msra.mxu0 %v2665
        %3176 = vmatpush.bf16.msra.mxu0 %v2654
        %3177 = vmatpush.bf16.msra.mxu0 %v2643
        %3178 = vmatmul.bf16.gmra.mxu0 %v1872
        %v3179 = vpop.f32.mrf.mxu0
        %v3180 = vadd.f32 %v2077, %v3179
        %v3181 = vpop.f32.mrf.mxu0
        %3182 = vdwg.mxu0
        %3183 = vmatpush.bf16.msra.mxu0 %v2808
        %3184 = vmatpush.bf16.msra.mxu0 %v2797
        %3185 = vmatpush.bf16.msra.mxu0 %v2786
        %3186 = vmatpush.bf16.msra.mxu0 %v2775
        %3187 = vmatpush.bf16.msra.mxu0 %v2764
        %3188 = vmatpush.bf16.msra.mxu0 %v2753
        %3189 = vmatpush.bf16.msra.mxu0 %v2742
        %3190 = vmatpush.bf16.msra.mxu0 %v2731
        %3191 = vmatmul.bf16.gmra.mxu0 %v1873
        %v3192 = vpop.f32.mrf.mxu0
        %v3193 = vadd.f32 %v3180, %v3192
        %v3194 = vpop.f32.mrf.mxu0
        %3195 = vdwg.mxu0
        %3196 = vmatpush.bf16.msra.mxu0 %v2721
        %3197 = vmatpush.bf16.msra.mxu0 %v2710
        %3198 = vmatpush.bf16.msra.mxu0 %v2699
        %3199 = vmatpush.bf16.msra.mxu0 %v2688
        %3200 = vmatpush.bf16.msra.mxu0 %v2677
        %3201 = vmatpush.bf16.msra.mxu0 %v2666
        %3202 = vmatpush.bf16.msra.mxu0 %v2655
        %3203 = vmatpush.bf16.msra.mxu0 %v2644
        %3204 = vmatmul.bf16.gmra.mxu0 %v1872
        %v3205 = vpop.f32.mrf.mxu0
        %v3206 = vadd.f32 %v2078, %v3205
        %v3207 = vpop.f32.mrf.mxu0
        %3208 = vdwg.mxu0
        %3209 = vmatpush.bf16.msra.mxu0 %v2809
        %3210 = vmatpush.bf16.msra.mxu0 %v2798
        %3211 = vmatpush.bf16.msra.mxu0 %v2787
        %3212 = vmatpush.bf16.msra.mxu0 %v2776
        %3213 = vmatpush.bf16.msra.mxu0 %v2765
        %3214 = vmatpush.bf16.msra.mxu0 %v2754
        %3215 = vmatpush.bf16.msra.mxu0 %v2743
        %3216 = vmatpush.bf16.msra.mxu0 %v2732
        %3217 = vmatmul.bf16.gmra.mxu0 %v1873
        %v3218 = vpop.f32.mrf.mxu0
        %v3219 = vadd.f32 %v3206, %v3218
        %v3220 = vpop.f32.mrf.mxu0
        %3221 = vdwg.mxu0
        %3222 = vmatpush.bf16.msra.mxu0 %v2722
        %3223 = vmatpush.bf16.msra.mxu0 %v2711
        %3224 = vmatpush.bf16.msra.mxu0 %v2700
        %3225 = vmatpush.bf16.msra.mxu0 %v2689
        %3226 = vmatpush.bf16.msra.mxu0 %v2678
        %3227 = vmatpush.bf16.msra.mxu0 %v2667
        %3228 = vmatpush.bf16.msra.mxu0 %v2656
        %3229 = vmatpush.bf16.msra.mxu0 %v2645
        %3230 = vmatmul.bf16.gmra.mxu0 %v1872
        %v3231 = vpop.f32.mrf.mxu0
        %v3232 = vadd.f32 %v2079, %v3231
        %v3233 = vpop.f32.mrf.mxu0
        %3234 = vdwg.mxu0
        %3235 = vmatpush.bf16.msra.mxu0 %v2810
        %3236 = vmatpush.bf16.msra.mxu0 %v2799
        %3237 = vmatpush.bf16.msra.mxu0 %v2788
        %3238 = vmatpush.bf16.msra.mxu0 %v2777
        %3239 = vmatpush.bf16.msra.mxu0 %v2766
        %3240 = vmatpush.bf16.msra.mxu0 %v2755
        %3241 = vmatpush.bf16.msra.mxu0 %v2744
        %3242 = vmatpush.bf16.msra.mxu0 %v2733
        %3243 = vmatmul.bf16.gmra.mxu0 %v1873
        %v3244 = vpop.f32.mrf.mxu0
        %v3245 = vadd.f32 %v3232, %v3244
        %v3246 = vpop.f32.mrf.mxu0
        %3247 = vdwg.mxu0
        %3248 = vmatpush.bf16.msra.mxu0 %v2723
        %3249 = vmatpush.bf16.msra.mxu0 %v2712
        %3250 = vmatpush.bf16.msra.mxu0 %v2701
        %3251 = vmatpush.bf16.msra.mxu0 %v2690
        %3252 = vmatpush.bf16.msra.mxu0 %v2679
        %3253 = vmatpush.bf16.msra.mxu0 %v2668
        %3254 = vmatpush.bf16.msra.mxu0 %v2657
        %3255 = vmatpush.bf16.msra.mxu0 %v2646
        %3256 = vmatmul.bf16.gmra.mxu0 %v1872
        %v3257 = vpop.f32.mrf.mxu0
        %v3258 = vadd.f32 %v2080, %v3257
        %v3259 = vpop.f32.mrf.mxu0
        %3260 = vdwg.mxu0
        %3261 = vmatpush.bf16.msra.mxu0 %v2811
        %3262 = vmatpush.bf16.msra.mxu0 %v2800
        %3263 = vmatpush.bf16.msra.mxu0 %v2789
        %3264 = vmatpush.bf16.msra.mxu0 %v2778
        %3265 = vmatpush.bf16.msra.mxu0 %v2767
        %3266 = vmatpush.bf16.msra.mxu0 %v2756
        %3267 = vmatpush.bf16.msra.mxu0 %v2745
        %3268 = vmatpush.bf16.msra.mxu0 %v2734
        %3269 = vmatmul.bf16.gmra.mxu0 %v1873
        %v3270 = vpop.f32.mrf.mxu0
        %v3271 = vadd.f32 %v3258, %v3270
        %v3272 = vpop.f32.mrf.mxu0
        %3273 = vdwg.mxu0
        %v3274 = vpack.c.bf16 %v3037, %v3011
        %v3275 = vpack.c.bf16 %v3089, %v3063
        %v3276 = vpack.c.bf16 %v3141, %v3115
        %v3277 = vpack.c.bf16 %v3193, %v3167
        %v3278 = vpack.c.bf16 %v3245, %v3219
        %v3279 = vpack.c.bf16 %v3271, %v3271
        %3280 = vst [vmem:[%s375] sm:$0xff] %v3274
        %3281 = vst [vmem:[%s375 + $0x8] sm:$0xff] %v3275
        %3282 = vst [vmem:[%s375 + $0x10] sm:$0xff] %v3276
        %3283 = vst [vmem:[%s375 + $0x18] sm:$0xff] %v3277
        %3284 = vst [vmem:[%s375 + $0x20] sm:$0xff] %v3278
        %3285 = vst [vmem:[%s375 + $0x28] sm:$0xf] %v3279
        %s3286 = sand.u32 %s187, 1
        %s3287 = scalar_lea.sflag [#allocation4], %s3286
        %s3288 = sand.u32 %s187, 1
        %s3289 = smul.addr %s3288, 44
        %s3290 = scalar_lea.vmem [#allocation13], %s3289
        // Predicated region
        $region73: #{tpu_custom_call.1} parent=47 // pred_check
          %p3291 = pneg %p197
        $region74: #{tpu_custom_call.1} parent=47 // pred_check_branch
          %3293 = sbr.rel (%p3291) target = $region76
        $region75: #{tpu_custom_call.1} parent=47 // pred_region
          %3295 = vsyncadd %s3287, 0
          %s3296 = smul.addr %s27, 11
          %s3297 = smul.addr %s3296, 4
          %s3298 = scalar_lea.hbm %s7, %s3297
          %s3300 = sshll.u32 %s3290, 4
          %s3301 = int_to_ptr.vmem [resolvable:$true] %s3300
          %s3302 = sshll.u32 %s3298, 4
          %s3303 = int_to_ptr.hbm [resolvable:$true] %s3302
          %3305 = dma.vmem_to_hbm [thread:$0]  %s3301, 704, %s3303, %s3287
        $region76: #{tpu_custom_call.1} parent=47 // pred_fallthru
          _
      $region48: #{tpu_custom_call.1} parent=5 // pred_fallthru
        _
      %p3306 = scmp.le.s32.totalorder 2, %s22
      // Predicated region
      $region77: #{tpu_custom_call.1} parent=5 // pred_check
        %p3307 = pneg %p3306
      $region78: #{tpu_custom_call.1} parent=5 // pred_check_branch
        %3309 = sbr.rel (%p3307) target = $region80
      $region79: #{tpu_custom_call.1} parent=5 // pred_region
        %s3310 = ssub.s32 %s22, 2
        // Predicated region
        $region81: #{tpu_custom_call.1} parent=79 // pred_check
          %p3311 = pneg %p203
        $region82: #{tpu_custom_call.1} parent=79 // pred_check_branch
          %3313 = sbr.rel (%p3311) target = $region84
        $region83: #{tpu_custom_call.1} parent=79 // pred_region
          %s3314 = sand.u32 %s188, 1
          %s3315 = scalar_lea.sflag [#allocation4], %s3314
          %s3316 = sand.u32 %s188, 1
          %s3317 = smul.addr %s3316, 44
          %s3318 = scalar_lea.vmem [#allocation13], %s3317
          %3320 = dma.done %s3315, 704
        $region84: #{tpu_custom_call.1} parent=79 // pred_fallthru
          _
      $region80: #{tpu_custom_call.1} parent=5 // pred_fallthru
        _
    $region6: #{tpu_custom_call.1} parent=1 // loop_footer
      %s26 = sadd.s32 1, %s22
    $region7: #{tpu_custom_call.1} parent=1 // loop_footer_branch
      %21 = sbr.rel target = $region3
    $region8: #{tpu_custom_call.1} parent=1 // loop_exit
      _
    %3321 = vsyncpa [#allocation3], 1
    %s3322 = scalar_lea.sflag [#allocation3], 1
    %3323 = vsyncpa %s3322, 1
    %3324 = vsyncpa [#allocation6], 1
    %3325 = vsyncpa [#allocation9], 1
    %3326 = vsyncpa [#allocation12], 1
    %3327 = vsyncpa [#allocation4], 1
    %s3328 = scalar_lea.sflag [#allocation4], 1
    %3329 = vsyncpa %s3328, 1

</llo_original>
